<compile_context>
chip_gen: v5e
topology: v5e:2x2
jax: 0.10.0
libtpu: 0.0.40
codegen_flags: <defaults>
</compile_context>

<pallas_src>
import functools

import jax
import jax.numpy as jnp
from jax.experimental import pallas as pl
from jax.experimental.pallas import tpu as pltpu


def _projection_kernel(c_ref, p_ref, w1_ref, b1_ref, w2_ref, b2_ref,
                       w3_ref, b3_ref, c_out_ref, p_out_ref, *, inv_s):
    """One (batch-tile, seq-tile) step of mean-pool + 3-layer MLP projection.

    c_ref, p_ref : [tb, ts, E]  hidden-state blocks (native dtype)
    w1_ref [E,H] b1_ref [1,H] w2_ref [H,H] b2_ref [1,H] w3_ref [H,E] b3_ref [1,E]
    c_out_ref, p_out_ref : [tb, E] f32 (resident across the seq axis)
    """
    si = pl.program_id(1)

    # Partial sequence sums for this block, accumulated in f32.
    c_part = jnp.sum(c_ref[...].astype(jnp.float32), axis=1)   # [tb, E]
    p_part = jnp.sum(p_ref[...].astype(jnp.float32), axis=1)   # [tb, E]

    @pl.when(si == 0)
    def _init():
        c_out_ref[...] = jnp.zeros_like(c_out_ref)
        p_out_ref[...] = jnp.zeros_like(p_out_ref)

    # Output blocks have seq-invariant index_maps -> they act as accumulators.
    c_out_ref[...] += c_part
    p_out_ref[...] += p_part

    @pl.when(si == pl.num_programs(1) - 1)
    def _finalize():
        # c-code embedding: plain mean over the sequence.
        c_out_ref[...] *= inv_s
        # pseudocode embedding: mean -> Linear/ReLU/Linear/ReLU/Linear.
        x = p_out_ref[...] * inv_s
        h1 = jnp.dot(x, w1_ref[...], preferred_element_type=jnp.float32)
        h1 = jnp.maximum(h1 + b1_ref[...], 0.0)
        h2 = jnp.dot(h1, w2_ref[...], preferred_element_type=jnp.float32)
        h2 = jnp.maximum(h2 + b2_ref[...], 0.0)
        p_out_ref[...] = (jnp.dot(h2, w3_ref[...],
                                  preferred_element_type=jnp.float32)
                          + b3_ref[...])


def _pick_tiles(B, S, E, in_itemsize, resident_bytes):
    """Choose (batch_tile, padded_batch, seq_tile) under a VMEM budget."""
    budget = max(4 << 20, (40 << 20) - resident_bytes)

    def cost(tb, ts):
        # two hidden-state streams, each double-buffered by the pipeline
        return 2 * 2 * tb * ts * E * in_itemsize

    # seq tile must be a multiple of 8 (sublane rule) or the full sequence,
    # and must divide S exactly so no padding garbage enters the sum.
    seq_cands = sorted({d for d in range(8, S + 1, 8) if S % d == 0} | {S},
                       reverse=True)

    # Prefer the whole batch in one block (no output padding / OOB tail).
    for ts in seq_cands:
        if cost(B, ts) <= budget:
            return B, B, ts

    # Otherwise also tile the batch in multiples of 8.
    ts = seq_cands[-1]
    tb = budget // (2 * 2 * ts * E * in_itemsize)
    tb = max(8, (tb // 8) * 8)
    tb = min(tb, pl.cdiv(B, 8) * 8)
    b_pad = pl.cdiv(B, tb) * tb
    return tb, b_pad, ts


@jax.jit
def projection_forward(c_hidden, p_hidden, w1, b1, w2, b2, w3, b3):
    B, S, E = c_hidden.shape
    H = w1.shape[1]
    in_itemsize = c_hidden.dtype.itemsize

    b1m = b1.reshape(1, H)
    b2m = b2.reshape(1, H)
    b3m = b3.reshape(1, E)

    resident = ((w1.size + w2.size + w3.size) * w1.dtype.itemsize
                + (b1m.size + b2m.size + b3m.size) * b1m.dtype.itemsize)
    tb, b_pad, ts = _pick_tiles(B, S, E, in_itemsize, resident)
    grid = (b_pad // tb, S // ts)

    est_vmem = (resident
                + 2 * 2 * tb * ts * E * in_itemsize   # hidden streams, dbl-buffered
                + 2 * 2 * tb * E * 4)                  # output blocks
    vmem_limit = (min(int(est_vmem) + (8 << 20), 60 << 20)
                  if est_vmem > (28 << 20) else None)

    cost = pl.CostEstimate(
        flops=2 * B * (E * H + H * H + H * E) + 2 * B * S * E,
        transcendentals=0,
        bytes_accessed=(2 * B * S * E * in_itemsize   # both hidden streams
                        + resident                    # weights/biases (once)
                        + 2 * b_pad * E * 4),         # f32 outputs
    )

    c_emb, p_emb = pl.pallas_call(
        functools.partial(_projection_kernel, inv_s=1.0 / S),
        out_shape=(
            jax.ShapeDtypeStruct((b_pad, E), jnp.float32),
            jax.ShapeDtypeStruct((b_pad, E), jnp.float32),
        ),
        grid=grid,
        in_specs=[
            # hidden states: tiled over (batch, seq), double-buffered DMA
            pl.BlockSpec((tb, ts, E), lambda bi, si: (bi, si, 0)),
            pl.BlockSpec((tb, ts, E), lambda bi, si: (bi, si, 0)),
            # weights / biases: constant index_map -> resident in VMEM
            pl.BlockSpec((E, H), lambda bi, si: (0, 0)),
            pl.BlockSpec((1, H), lambda bi, si: (0, 0)),
            pl.BlockSpec((H, H), lambda bi, si: (0, 0)),
            pl.BlockSpec((1, H), lambda bi, si: (0, 0)),
            pl.BlockSpec((H, E), lambda bi, si: (0, 0)),
            pl.BlockSpec((1, E), lambda bi, si: (0, 0)),
        ],
        out_specs=(
            pl.BlockSpec((tb, E), lambda bi, si: (bi, 0)),
            pl.BlockSpec((tb, E), lambda bi, si: (bi, 0)),
        ),
        compiler_params=pltpu.CompilerParams(
            dimension_semantics=("parallel", "arbitrary"),
            vmem_limit_bytes=vmem_limit,
        ),
        cost_estimate=cost,
    )(c_hidden, p_hidden, w1, b1m, w2, b2m, w3, b3m)

    if b_pad != B:
        c_emb = c_emb[:B]
        p_emb = p_emb[:B]
    return c_emb, p_emb


def init_params(key, embed_dim, hidden_dim):
    """Deterministic PyTorch-Linear-style init (uniform +-1/sqrt(fan_in))."""
    ks = jax.random.split(key, 6)

    def lin(kw, kb, fan_in, fan_out):
        bound = 1.0 / jnp.sqrt(fan_in)
        w = jax.random.uniform(kw, (fan_in, fan_out), jnp.float32, -bound, bound)
        b = jax.random.uniform(kb, (1, fan_out), jnp.float32, -bound, bound)
        return w, b

    w1, b1 = lin(ks[0], ks[1], embed_dim, hidden_dim)
    w2, b2 = lin(ks[2], ks[3], hidden_dim, hidden_dim)
    w3, b3 = lin(ks[4], ks[5], hidden_dim, embed_dim)
    return w1, b1, w2, b2, w3, b3


def reference_forward(c_hidden, p_hidden, w1, b1, w2, b2, w3, b3):
    """Plain-JAX reference of the module's forward (f32 end to end)."""
    c_emb = jnp.mean(c_hidden, axis=1)
    p = jnp.mean(p_hidden, axis=1)
    h1 = jnp.maximum(p @ w1 + b1.reshape(1, -1), 0.0)
    h2 = jnp.maximum(h1 @ w2 + b2.reshape(1, -1), 0.0)
    return c_emb, h2 @ w3 + b3.reshape(1, -1)


if __name__ == "__main__":
    # Scaled-down shapes consistent with the module's forward:
    # last_hidden_state = [batch, seq, embedding_dim], MLP hidden = hidden_dim.
    B, S = 4, 8
    E, H = 256, 512

    key = jax.random.PRNGKey(0)
    k_c, k_p, k_params = jax.random.split(key, 3)

    c_code_hidden = jax.random.normal(k_c, (B, S, E), jnp.float32)
    pseudo_hidden = jax.random.normal(k_p, (B, S, E), jnp.float32)
    w1, b1, w2, b2, w3, b3 = init_params(k_params, E, H)

    c_emb, p_emb = projection_forward(
        c_code_hidden, pseudo_hidden, w1, b1, w2, b2, w3, b3)
    jax.block_until_ready((c_emb, p_emb))

    c_ref, p_ref = reference_forward(
        c_code_hidden, pseudo_hidden, w1, b1, w2, b2, w3, b3)
    assert c_emb.shape == (B, E) and p_emb.shape == (B, E)
    assert jnp.allclose(c_emb, c_ref, atol=1e-2, rtol=1e-2)
    assert jnp.allclose(p_emb, p_ref, atol=1e-2, rtol=1e-2)

    print("KERNEL_OK")
</pallas_src>

<mosaic_0001>
module attributes {stable_mosaic.version = 11 : i64} {
  func.func @_projection_kernel(%arg0: i32, %arg1: i32, %arg2: memref<4x8x256xf32, #tpu.memory_space<vmem>>, %arg3: memref<4x8x256xf32, #tpu.memory_space<vmem>>, %arg4: memref<256x512xf32, #tpu.memory_space<vmem>>, %arg5: memref<1x512xf32, #tpu.memory_space<vmem>>, %arg6: memref<512x512xf32, #tpu.memory_space<vmem>>, %arg7: memref<1x512xf32, #tpu.memory_space<vmem>>, %arg8: memref<512x256xf32, #tpu.memory_space<vmem>>, %arg9: memref<1x256xf32, #tpu.memory_space<vmem>>, %arg10: memref<4x256xf32, #tpu.memory_space<vmem>>, %arg11: memref<4x256xf32, #tpu.memory_space<vmem>>) attributes {dimension_semantics = [#tpu.dimension_semantics<parallel>, #tpu.dimension_semantics<arbitrary>], iteration_bounds = array<i64: 1, 1>, scalar_prefetch = 0 : i64, scratch_operands = 0 : i64, tpu.core_type = #tpu.core_type<tc>, window_params = [{transform_indices = @transform_0, window_bounds = array<i64: 4, 8, 256>}, {transform_indices = @transform_1, window_bounds = array<i64: 4, 8, 256>}, {pipeline_mode = #tpu.pipeline_mode<synchronous>, transform_indices = @transform_2, window_bounds = array<i64: 256, 512>}, {pipeline_mode = #tpu.pipeline_mode<synchronous>, transform_indices = @transform_3, window_bounds = array<i64: 1, 512>}, {pipeline_mode = #tpu.pipeline_mode<synchronous>, transform_indices = @transform_4, window_bounds = array<i64: 512, 512>}, {pipeline_mode = #tpu.pipeline_mode<synchronous>, transform_indices = @transform_5, window_bounds = array<i64: 1, 512>}, {pipeline_mode = #tpu.pipeline_mode<synchronous>, transform_indices = @transform_6, window_bounds = array<i64: 512, 256>}, {pipeline_mode = #tpu.pipeline_mode<synchronous>, transform_indices = @transform_7, window_bounds = array<i64: 1, 256>}, {transform_indices = @transform_8, window_bounds = array<i64: 4, 256>}, {transform_indices = @transform_9, window_bounds = array<i64: 4, 256>}]} {
    %c0 = arith.constant 0 : index
    %c0_0 = arith.constant 0 : index
    %c0_1 = arith.constant 0 : index
    %0 = vector.load %arg2[%c0, %c0_0, %c0_1] : memref<4x8x256xf32, #tpu.memory_space<vmem>>, vector<4x8x256xf32>
    %cst = arith.constant dense<0.000000e+00> : vector<4x256xf32>
    %1 = vector.multi_reduction <add>, %0, %cst [1] : vector<4x8x256xf32> to vector<4x256xf32>
    %c0_2 = arith.constant 0 : index
    %c0_3 = arith.constant 0 : index
    %c0_4 = arith.constant 0 : index
    %2 = vector.load %arg3[%c0_2, %c0_3, %c0_4] : memref<4x8x256xf32, #tpu.memory_space<vmem>>, vector<4x8x256xf32>
    %cst_5 = arith.constant dense<0.000000e+00> : vector<4x256xf32>
    %3 = vector.multi_reduction <add>, %2, %cst_5 [1] : vector<4x8x256xf32> to vector<4x256xf32>
    %c0_i32 = arith.constant 0 : i32
    %4 = arith.cmpi eq, %arg1, %c0_i32 : i32
    %5 = arith.extui %4 : i1 to i32
    %c0_i32_6 = arith.constant 0 : i32
    %6 = arith.cmpi ne, %5, %c0_i32_6 : i32
    scf.if %6 {
      %cst_17 = arith.constant 0.000000e+00 : f32
      %16 = vector.broadcast %cst_17 : f32 to vector<4x256xf32>
      %c0_18 = arith.constant 0 : index
      %c0_19 = arith.constant 0 : index
      %17 = vector.load %arg10[%c0_18, %c0_19] : memref<4x256xf32, #tpu.memory_space<vmem>>, vector<4x256xf32>
      tpu.vector_store %arg10[%c0_18, %c0_19], %16 {strides = array<i32>} : memref<4x256xf32, #tpu.memory_space<vmem>>, vector<4x256xf32>,
      %cst_20 = arith.constant 0.000000e+00 : f32
      %18 = vector.broadcast %cst_20 : f32 to vector<4x256xf32>
      %c0_21 = arith.constant 0 : index
      %c0_22 = arith.constant 0 : index
      %19 = vector.load %arg11[%c0_21, %c0_22] : memref<4x256xf32, #tpu.memory_space<vmem>>, vector<4x256xf32>
      tpu.vector_store %arg11[%c0_21, %c0_22], %18 {strides = array<i32>} : memref<4x256xf32, #tpu.memory_space<vmem>>, vector<4x256xf32>,
    } else {
    }
    %c0_7 = arith.constant 0 : index
    %c0_8 = arith.constant 0 : index
    %7 = vector.load %arg10[%c0_7, %c0_8] : memref<4x256xf32, #tpu.memory_space<vmem>>, vector<4x256xf32>
    %8 = arith.addf %7, %1 : vector<4x256xf32>
    %c0_9 = arith.constant 0 : index
    %c0_10 = arith.constant 0 : index
    %9 = vector.load %arg10[%c0_9, %c0_10] : memref<4x256xf32, #tpu.memory_space<vmem>>, vector<4x256xf32>
    tpu.vector_store %arg10[%c0_9, %c0_10], %8 {strides = array<i32>} : memref<4x256xf32, #tpu.memory_space<vmem>>, vector<4x256xf32>,
    %c0_11 = arith.constant 0 : index
    %c0_12 = arith.constant 0 : index
    %10 = vector.load %arg11[%c0_11, %c0_12] : memref<4x256xf32, #tpu.memory_space<vmem>>, vector<4x256xf32>
    %11 = arith.addf %10, %3 : vector<4x256xf32>
    %c0_13 = arith.constant 0 : index
    %c0_14 = arith.constant 0 : index
    %12 = vector.load %arg11[%c0_13, %c0_14] : memref<4x256xf32, #tpu.memory_space<vmem>>, vector<4x256xf32>
    tpu.vector_store %arg11[%c0_13, %c0_14], %11 {strides = array<i32>} : memref<4x256xf32, #tpu.memory_space<vmem>>, vector<4x256xf32>,
    %c0_i32_15 = arith.constant 0 : i32
    %13 = arith.cmpi eq, %arg1, %c0_i32_15 : i32
    %14 = arith.extui %13 : i1 to i32
    %c0_i32_16 = arith.constant 0 : i32
    %15 = arith.cmpi ne, %14, %c0_i32_16 : i32
    scf.if %15 {
      %c0_17 = arith.constant 0 : index
      %c0_18 = arith.constant 0 : index
      %16 = vector.load %arg10[%c0_17, %c0_18] : memref<4x256xf32, #tpu.memory_space<vmem>>, vector<4x256xf32>
      %cst_19 = arith.constant 1.250000e-01 : f32
      %17 = vector.broadcast %cst_19 : f32 to vector<4x256xf32>
      %18 = arith.mulf %16, %17 : vector<4x256xf32>
      %c0_20 = arith.constant 0 : index
      %c0_21 = arith.constant 0 : index
      %19 = vector.load %arg10[%c0_20, %c0_21] : memref<4x256xf32, #tpu.memory_space<vmem>>, vector<4x256xf32>
      tpu.vector_store %arg10[%c0_20, %c0_21], %18 {strides = array<i32>} : memref<4x256xf32, #tpu.memory_space<vmem>>, vector<4x256xf32>,
      %c0_22 = arith.constant 0 : index
      %c0_23 = arith.constant 0 : index
      %20 = vector.load %arg11[%c0_22, %c0_23] : memref<4x256xf32, #tpu.memory_space<vmem>>, vector<4x256xf32>
      %cst_24 = arith.constant 1.250000e-01 : f32
      %21 = vector.broadcast %cst_24 : f32 to vector<4x256xf32>
      %22 = arith.mulf %20, %21 : vector<4x256xf32>
      %c0_25 = arith.constant 0 : index
      %c0_26 = arith.constant 0 : index
      %23 = vector.load %arg4[%c0_25, %c0_26] : memref<256x512xf32, #tpu.memory_space<vmem>>, vector<256x512xf32>
      %cst_27 = arith.constant dense<0.000000e+00> : vector<4x512xf32>
      %24 = tpu.matmul %22, %23, %cst_27 {dimension_numbers = #tpu.dot_dimension_numbers<[1], [0], [0], [1], [0, 0, 1, 1], [], []>} : vector<4x256xf32>, vector<256x512xf32>, vector<4x512xf32> -> vector<4x512xf32>
      %c0_28 = arith.constant 0 : index
      %c0_29 = arith.constant 0 : index
      %25 = vector.load %arg5[%c0_28, %c0_29] : memref<1x512xf32, #tpu.memory_space<vmem>>, vector<1x512xf32>
      %26 = vector.broadcast %25 : vector<1x512xf32> to vector<4x512xf32>
      %27 = arith.addf %24, %26 : vector<4x512xf32>
      %cst_30 = arith.constant 0.000000e+00 : f32
      %28 = vector.broadcast %cst_30 : f32 to vector<4x512xf32>
      %29 = arith.maximumf %27, %28 : vector<4x512xf32>
      %c0_31 = arith.constant 0 : index
      %c0_32 = arith.constant 0 : index
      %30 = vector.load %arg6[%c0_31, %c0_32] : memref<512x512xf32, #tpu.memory_space<vmem>>, vector<512x512xf32>
      %cst_33 = arith.constant dense<0.000000e+00> : vector<4x512xf32>
      %31 = tpu.matmul %29, %30, %cst_33 {dimension_numbers = #tpu.dot_dimension_numbers<[1], [0], [0], [1], [0, 0, 1, 1], [], []>} : vector<4x512xf32>, vector<512x512xf32>, vector<4x512xf32> -> vector<4x512xf32>
      %c0_34 = arith.constant 0 : index
      %c0_35 = arith.constant 0 : index
      %32 = vector.load %arg7[%c0_34, %c0_35] : memref<1x512xf32, #tpu.memory_space<vmem>>, vector<1x512xf32>
      %33 = vector.broadcast %32 : vector<1x512xf32> to vector<4x512xf32>
      %34 = arith.addf %31, %33 : vector<4x512xf32>
      %cst_36 = arith.constant 0.000000e+00 : f32
      %35 = vector.broadcast %cst_36 : f32 to vector<4x512xf32>
      %36 = arith.maximumf %34, %35 : vector<4x512xf32>
      %c0_37 = arith.constant 0 : index
      %c0_38 = arith.constant 0 : index
      %37 = vector.load %arg8[%c0_37, %c0_38] : memref<512x256xf32, #tpu.memory_space<vmem>>, vector<512x256xf32>
      %cst_39 = arith.constant dense<0.000000e+00> : vector<4x256xf32>
      %38 = tpu.matmul %36, %37, %cst_39 {dimension_numbers = #tpu.dot_dimension_numbers<[1], [0], [0], [1], [0, 0, 1, 1], [], []>} : vector<4x512xf32>, vector<512x256xf32>, vector<4x256xf32> -> vector<4x256xf32>
      %c0_40 = arith.constant 0 : index
      %c0_41 = arith.constant 0 : index
      %39 = vector.load %arg9[%c0_40, %c0_41] : memref<1x256xf32, #tpu.memory_space<vmem>>, vector<1x256xf32>
      %40 = vector.broadcast %39 : vector<1x256xf32> to vector<4x256xf32>
      %41 = arith.addf %38, %40 : vector<4x256xf32>
      %c0_42 = arith.constant 0 : index
      %c0_43 = arith.constant 0 : index
      %42 = vector.load %arg11[%c0_42, %c0_43] : memref<4x256xf32, #tpu.memory_space<vmem>>, vector<4x256xf32>
      tpu.vector_store %arg11[%c0_42, %c0_43], %41 {strides = array<i32>} : memref<4x256xf32, #tpu.memory_space<vmem>>, vector<4x256xf32>,
    } else {
    }
    return
  }
  func.func @transform_0(%arg0: i32, %arg1: i32) -> (i32, i32, i32) {
    %c0_i32 = arith.constant 0 : i32
    %c0_i32_0 = arith.constant 0 : i32
    return %arg0, %arg1, %c0_i32 : i32, i32, i32
  }
  func.func @transform_1(%arg0: i32, %arg1: i32) -> (i32, i32, i32) {
    %c0_i32 = arith.constant 0 : i32
    %c0_i32_0 = arith.constant 0 : i32
    return %arg0, %arg1, %c0_i32 : i32, i32, i32
  }
  func.func @transform_2(%arg0: i32, %arg1: i32) -> (i32, i32) {
    %c0_i32 = arith.constant 0 : i32
    %c0_i32_0 = arith.constant 0 : i32
    %c0_i32_1 = arith.constant 0 : i32
    return %c0_i32, %c0_i32_0 : i32, i32
  }
  func.func @transform_3(%arg0: i32, %arg1: i32) -> (i32, i32) {
    %c0_i32 = arith.constant 0 : i32
    %c0_i32_0 = arith.constant 0 : i32
    %c0_i32_1 = arith.constant 0 : i32
    return %c0_i32, %c0_i32_0 : i32, i32
  }
  func.func @transform_4(%arg0: i32, %arg1: i32) -> (i32, i32) {
    %c0_i32 = arith.constant 0 : i32
    %c0_i32_0 = arith.constant 0 : i32
    %c0_i32_1 = arith.constant 0 : i32
    return %c0_i32, %c0_i32_0 : i32, i32
  }
  func.func @transform_5(%arg0: i32, %arg1: i32) -> (i32, i32) {
    %c0_i32 = arith.constant 0 : i32
    %c0_i32_0 = arith.constant 0 : i32
    %c0_i32_1 = arith.constant 0 : i32
    return %c0_i32, %c0_i32_0 : i32, i32
  }
  func.func @transform_6(%arg0: i32, %arg1: i32) -> (i32, i32) {
    %c0_i32 = arith.constant 0 : i32
    %c0_i32_0 = arith.constant 0 : i32
    %c0_i32_1 = arith.constant 0 : i32
    return %c0_i32, %c0_i32_0 : i32, i32
  }
  func.func @transform_7(%arg0: i32, %arg1: i32) -> (i32, i32) {
    %c0_i32 = arith.constant 0 : i32
    %c0_i32_0 = arith.constant 0 : i32
    %c0_i32_1 = arith.constant 0 : i32
    return %c0_i32, %c0_i32_0 : i32, i32
  }
  func.func @transform_8(%arg0: i32, %arg1: i32) -> (i32, i32) {
    %c0_i32 = arith.constant 0 : i32
    %c0_i32_0 = arith.constant 0 : i32
    return %arg0, %c0_i32 : i32, i32
  }
  func.func @transform_9(%arg0: i32, %arg1: i32) -> (i32, i32) {
    %c0_i32 = arith.constant 0 : i32
    %c0_i32_0 = arith.constant 0 : i32
    return %arg0, %c0_i32 : i32, i32
  }
}

</mosaic_0001>

<llo_original>
// kernel: projection_forward.1
$region0: #{projection_forward.1}
  #allocation0 [shape = 'u32[]', space=smem, size = 0x4, offset = 0x4, fixed_abs, tag = 'smem constant byte address 0x4 - core index']
  #allocation1 [shape = 'u32[72,128]{1,0:T(1,128)}', space=vmem, size = 0x9000, scoped, tag = 'internal scratch']
  %s0 = inlined_call_operand.hbm [shape: f32[4,8,256], index: 0, kind: input, shape index: {}]
  %s1 = inlined_call_operand.hbm [shape: f32[4,8,256], index: 1, kind: input, shape index: {}]
  %s2 = inlined_call_operand.hbm [shape: f32[256,512], index: 2, kind: input, shape index: {}]
  %s3 = inlined_call_operand.hbm [shape: f32[1,512], index: 3, kind: input, shape index: {}]
  %s4 = inlined_call_operand.hbm [shape: f32[512,512], index: 4, kind: input, shape index: {}]
  %s5 = inlined_call_operand.vmem [shape: f32[1,512], index: 5, kind: input, shape index: {}]
  %s6 = inlined_call_operand.hbm [shape: f32[512,256], index: 6, kind: input, shape index: {}]
  %s7 = inlined_call_operand.vmem [shape: f32[1,256], index: 7, kind: input, shape index: {}]
  %s8 = inlined_call_operand.hbm [shape: f32[4,256], index: 8, kind: output, shape index: {0}]
  %s9 = inlined_call_operand.hbm [shape: f32[4,256], index: 9, kind: output, shape index: {1}]
  %10 = xla_tuple %s8, %s9
  %s11 = sld [smem:[#allocation0]]
  $region82: #{projection_forward.1} parent=0
    _
  %s13 = ssub.s32 1, %s11
  %s14 = scalar_select 0, %s13, %s11
  $region1: #{projection_forward.1} parent=0
    #allocation2 [shape = 'u8[32768]{0}', space=vmem, size = 0x8000, scoped, tag = 'input window, operand 0, single buffered']
    #allocation3 [shape = 's32[1]{0}', space=sflag, size = 0x4, scoped, tag = 'scoped memory for projection_forward.1']
    #allocation4 [shape = 's32[1]{0}', space=sflag, size = 0x4, scoped, tag = 'scoped memory for projection_forward.1']
    #allocation5 [shape = 'u8[32768]{0}', space=vmem, size = 0x8000, scoped, tag = 'input window, operand 1, single buffered']
    #allocation6 [shape = 's32[1]{0}', space=sflag, size = 0x4, scoped, tag = 'scoped memory for projection_forward.1']
    #allocation7 [shape = 'u8[524288]{0}', space=vmem, size = 0x80000, scoped, tag = 'input window, operand 2, single buffered']
    #allocation8 [shape = 'u8[2048]{0}', space=vmem, size = 0x800, scoped, tag = 'input window, operand 3, single buffered']
    #allocation9 [shape = 's32[1]{0}', space=sflag, size = 0x4, scoped, tag = 'scoped memory for projection_forward.1']
    #allocation10 [shape = 'u8[1048576]{0}', space=vmem, size = 0x100000, scoped, tag = 'input window, operand 4, single buffered']
    #allocation11 [shape = 'u8[524288]{0}', space=vmem, size = 0x80000, scoped, tag = 'input window, operand 6, single buffered']
    #allocation12 [shape = 's32[1]{0}', space=sflag, size = 0x4, scoped, tag = 'scoped memory for projection_forward.1']
    #allocation13 [shape = 'u8[4096]{0}', space=vmem, size = 0x1000, scoped, tag = 'output window, operand 0, single buffered']
    #allocation14 [shape = 'u8[4096]{0}', space=vmem, size = 0x1000, scoped, tag = 'output window, operand 1, single buffered']
    #allocation15 [shape = 's32[1]{0}', space=sflag, size = 0x4, scoped, tag = 'scoped memory for projection_forward.1']
    %15 = vsyncpa [#allocation3], 0
    %16 = vsyncpa [#allocation6], 0
    %17 = vsyncpa [#allocation9], 0
    %18 = vsyncpa [#allocation12], 0
    %19 = vsyncpa [#allocation4], 0
    %20 = vsyncpa [#allocation15], 0
    // Predicated region
    $region2: #{projection_forward.1} parent=1 // pred_check
      _
    $region3: #{projection_forward.1} parent=1 // pred_check_branch
      %22 = sbr.rel (0) target = $region5
    $region4: #{projection_forward.1} parent=1 // pred_region
      %24 = vsyncadd [#allocation3], 0
      %s25 = sshll.u32 %s0, 4
      %s26 = int_to_ptr.hbm [resolvable:$true] %s25
      %s27 = sshll.u32 [#allocation2], 4
      %s28 = int_to_ptr.vmem [resolvable:$true] %s27
      %33 = dma.hbm_to_vmem [thread:$0]  %s26, 1024, %s28, [#allocation3], 256, 256, 16
    $region5: #{projection_forward.1} parent=1 // pred_fallthru
      _
    // Predicated region
    $region6: #{projection_forward.1} parent=1 // pred_check
      _
    $region7: #{projection_forward.1} parent=1 // pred_check_branch
      %35 = sbr.rel (0) target = $region9
    $region8: #{projection_forward.1} parent=1 // pred_region
      %37 = vsyncadd [#allocation6], 0
      %s38 = sshll.u32 %s1, 4
      %s39 = int_to_ptr.hbm [resolvable:$true] %s38
      %s40 = sshll.u32 [#allocation5], 4
      %s41 = int_to_ptr.vmem [resolvable:$true] %s40
      %46 = dma.hbm_to_vmem [thread:$0]  %s39, 1024, %s41, [#allocation6], 256, 256, 16
    $region9: #{projection_forward.1} parent=1 // pred_fallthru
      _
    // Predicated region
    $region10: #{projection_forward.1} parent=1 // pred_check
      _
    $region11: #{projection_forward.1} parent=1 // pred_check_branch
      %48 = sbr.rel (0) target = $region13
    $region12: #{projection_forward.1} parent=1 // pred_region
      %50 = vsyncadd [#allocation6], 0
      %s51 = sshll.u32 %s2, 4
      %s52 = int_to_ptr.hbm [resolvable:$true] %s51
      %s53 = sshll.u32 [#allocation7], 4
      %s54 = int_to_ptr.vmem [resolvable:$true] %s53
      %59 = dma.hbm_to_vmem [thread:$0]  %s52, 16384, %s54, [#allocation6], 512, 512, 32
    $region13: #{projection_forward.1} parent=1 // pred_fallthru
      _
    // Predicated region
    $region14: #{projection_forward.1} parent=1 // pred_check
      _
    $region15: #{projection_forward.1} parent=1 // pred_check_branch
      %61 = sbr.rel (0) target = $region17
    $region16: #{projection_forward.1} parent=1 // pred_region
      %63 = vsyncadd [#allocation9], 0
      %s65 = sshll.u32 %s3, 4
      %s66 = int_to_ptr.hbm [resolvable:$true] %s65
      %s67 = sshll.u32 [#allocation8], 4
      %s68 = int_to_ptr.vmem [resolvable:$true] %s67
      %70 = dma.hbm_to_vmem [thread:$0]  %s66, 64, %s68, [#allocation9]
    $region17: #{projection_forward.1} parent=1 // pred_fallthru
      _
    // Predicated region
    $region18: #{projection_forward.1} parent=1 // pred_check
      _
    $region19: #{projection_forward.1} parent=1 // pred_check_branch
      %72 = sbr.rel (0) target = $region21
    $region20: #{projection_forward.1} parent=1 // pred_region
      %74 = vsyncadd [#allocation9], 0
      %s75 = sshll.u32 %s4, 4
      %s76 = int_to_ptr.hbm [resolvable:$true] %s75
      %s77 = sshll.u32 [#allocation10], 4
      %s78 = int_to_ptr.vmem [resolvable:$true] %s77
      %83 = dma.hbm_to_vmem [thread:$0]  %s76, 32768, %s78, [#allocation9], 512, 512, 32
    $region21: #{projection_forward.1} parent=1 // pred_fallthru
      _
    // Predicated region
    $region22: #{projection_forward.1} parent=1 // pred_check
      _
    $region23: #{projection_forward.1} parent=1 // pred_check_branch
      %85 = sbr.rel (0) target = $region25
    $region24: #{projection_forward.1} parent=1 // pred_region
      _
    $region25: #{projection_forward.1} parent=1 // pred_fallthru
      _
    // Predicated region
    $region26: #{projection_forward.1} parent=1 // pred_check
      _
    $region27: #{projection_forward.1} parent=1 // pred_check_branch
      %87 = sbr.rel (0) target = $region29
    $region28: #{projection_forward.1} parent=1 // pred_region
      %89 = vsyncadd [#allocation12], 0
      %s90 = sshll.u32 %s6, 4
      %s91 = int_to_ptr.hbm [resolvable:$true] %s90
      %s92 = sshll.u32 [#allocation11], 4
      %s93 = int_to_ptr.vmem [resolvable:$true] %s92
      %98 = dma.hbm_to_vmem [thread:$0]  %s91, 16384, %s93, [#allocation12], 256, 256, 16
    $region29: #{projection_forward.1} parent=1 // pred_fallthru
      _
    // Predicated region
    $region30: #{projection_forward.1} parent=1 // pred_check
      _
    $region31: #{projection_forward.1} parent=1 // pred_check_branch
      %100 = sbr.rel (0) target = $region33
    $region32: #{projection_forward.1} parent=1 // pred_region
      _
    $region33: #{projection_forward.1} parent=1 // pred_fallthru
      _
    // Predicated region
    $region34: #{projection_forward.1} parent=1 // pred_check
      _
    $region35: #{projection_forward.1} parent=1 // pred_check_branch
      %102 = sbr.rel (0) target = $region37
    $region36: #{projection_forward.1} parent=1 // pred_region
      %104 = dma.done [#allocation3], 1024
    $region37: #{projection_forward.1} parent=1 // pred_fallthru
      _
    // Predicated region
    $region38: #{projection_forward.1} parent=1 // pred_check
      _
    $region39: #{projection_forward.1} parent=1 // pred_check_branch
      %106 = sbr.rel (0) target = $region41
    $region40: #{projection_forward.1} parent=1 // pred_region
      %108 = dma.done [#allocation6], 1024
    $region41: #{projection_forward.1} parent=1 // pred_fallthru
      _
    // Predicated region
    $region42: #{projection_forward.1} parent=1 // pred_check
      _
    $region43: #{projection_forward.1} parent=1 // pred_check_branch
      %110 = sbr.rel (0) target = $region45
    $region44: #{projection_forward.1} parent=1 // pred_region
      %112 = dma.done [#allocation6], 16384
    $region45: #{projection_forward.1} parent=1 // pred_fallthru
      _
    // Predicated region
    $region46: #{projection_forward.1} parent=1 // pred_check
      _
    $region47: #{projection_forward.1} parent=1 // pred_check_branch
      %114 = sbr.rel (0) target = $region49
    $region48: #{projection_forward.1} parent=1 // pred_region
      %116 = dma.done [#allocation9], 64
    $region49: #{projection_forward.1} parent=1 // pred_fallthru
      _
    // Predicated region
    $region50: #{projection_forward.1} parent=1 // pred_check
      _
    $region51: #{projection_forward.1} parent=1 // pred_check_branch
      %118 = sbr.rel (0) target = $region53
    $region52: #{projection_forward.1} parent=1 // pred_region
      %120 = dma.done [#allocation9], 32768
    $region53: #{projection_forward.1} parent=1 // pred_fallthru
      _
    // Predicated region
    $region54: #{projection_forward.1} parent=1 // pred_check
      _
    $region55: #{projection_forward.1} parent=1 // pred_check_branch
      %122 = sbr.rel (0) target = $region57
    $region56: #{projection_forward.1} parent=1 // pred_region
      %124 = dma.done [#allocation12], 16384
    $region57: #{projection_forward.1} parent=1 // pred_fallthru
      _
    %v125 = vld [vmem:[#allocation2] sm:$0xff]
    %v126 = vld [vmem:[#allocation2 + $0x8] sm:$0xff]
    %v127 = vld [vmem:[#allocation2 + $0x10] sm:$0xff]
    %v128 = vld [vmem:[#allocation2 + $0x18] sm:$0xff]
    %v129 = vld [vmem:[#allocation2 + $0x20] sm:$0xff]
    %v130 = vld [vmem:[#allocation2 + $0x28] sm:$0xff]
    %v131 = vld [vmem:[#allocation2 + $0x30] sm:$0xff]
    %v132 = vld [vmem:[#allocation2 + $0x38] sm:$0xff]
    %v133 = vrot.slane %v125, 4
    %v134 = vadd.f32 %v125, %v133
    %v135 = vrot.slane %v134, 2
    %v136 = vadd.f32 %v134, %v135
    %v137 = vrot.slane %v136, 1
    %v138 = vadd.f32 %v136, %v137
    %v139 = vrot.slane %v126, 4
    %v140 = vadd.f32 %v126, %v139
    %v141 = vrot.slane %v140, 2
    %v142 = vadd.f32 %v140, %v141
    %v143 = vrot.slane %v142, 1
    %v144 = vadd.f32 %v142, %v143
    %v145 = vrot.slane %v127, 4
    %v146 = vadd.f32 %v127, %v145
    %v147 = vrot.slane %v146, 2
    %v148 = vadd.f32 %v146, %v147
    %v149 = vrot.slane %v148, 1
    %v150 = vadd.f32 %v148, %v149
    %v151 = vrot.slane %v128, 4
    %v152 = vadd.f32 %v128, %v151
    %v153 = vrot.slane %v152, 2
    %v154 = vadd.f32 %v152, %v153
    %v155 = vrot.slane %v154, 1
    %v156 = vadd.f32 %v154, %v155
    %v157 = vrot.slane %v129, 4
    %v158 = vadd.f32 %v129, %v157
    %v159 = vrot.slane %v158, 2
    %v160 = vadd.f32 %v158, %v159
    %v161 = vrot.slane %v160, 1
    %v162 = vadd.f32 %v160, %v161
    %v163 = vrot.slane %v130, 4
    %v164 = vadd.f32 %v130, %v163
    %v165 = vrot.slane %v164, 2
    %v166 = vadd.f32 %v164, %v165
    %v167 = vrot.slane %v166, 1
    %v168 = vadd.f32 %v166, %v167
    %v169 = vrot.slane %v131, 4
    %v170 = vadd.f32 %v131, %v169
    %v171 = vrot.slane %v170, 2
    %v172 = vadd.f32 %v170, %v171
    %v173 = vrot.slane %v172, 1
    %v174 = vadd.f32 %v172, %v173
    %v175 = vrot.slane %v132, 4
    %v176 = vadd.f32 %v132, %v175
    %v177 = vrot.slane %v176, 2
    %v178 = vadd.f32 %v176, %v177
    %v179 = vrot.slane %v178, 1
    %v180 = vadd.f32 %v178, %v179
    %v181 = vld [vmem:[#allocation5] sm:$0xff]
    %v182 = vld [vmem:[#allocation5 + $0x8] sm:$0xff]
    %v183 = vld [vmem:[#allocation5 + $0x10] sm:$0xff]
    %v184 = vld [vmem:[#allocation5 + $0x18] sm:$0xff]
    %v185 = vld [vmem:[#allocation5 + $0x20] sm:$0xff]
    %v186 = vld [vmem:[#allocation5 + $0x28] sm:$0xff]
    %v187 = vld [vmem:[#allocation5 + $0x30] sm:$0xff]
    %v188 = vld [vmem:[#allocation5 + $0x38] sm:$0xff]
    %v189 = vrot.slane %v181, 4
    %v190 = vadd.f32 %v181, %v189
    %v191 = vrot.slane %v190, 2
    %v192 = vadd.f32 %v190, %v191
    %v193 = vrot.slane %v192, 1
    %v194 = vadd.f32 %v192, %v193
    %v195 = vrot.slane %v182, 4
    %v196 = vadd.f32 %v182, %v195
    %v197 = vrot.slane %v196, 2
    %v198 = vadd.f32 %v196, %v197
    %v199 = vrot.slane %v198, 1
    %v200 = vadd.f32 %v198, %v199
    %v201 = vrot.slane %v183, 4
    %v202 = vadd.f32 %v183, %v201
    %v203 = vrot.slane %v202, 2
    %v204 = vadd.f32 %v202, %v203
    %v205 = vrot.slane %v204, 1
    %v206 = vadd.f32 %v204, %v205
    %v207 = vrot.slane %v184, 4
    %v208 = vadd.f32 %v184, %v207
    %v209 = vrot.slane %v208, 2
    %v210 = vadd.f32 %v208, %v209
    %v211 = vrot.slane %v210, 1
    %v212 = vadd.f32 %v210, %v211
    %v213 = vrot.slane %v185, 4
    %v214 = vadd.f32 %v185, %v213
    %v215 = vrot.slane %v214, 2
    %v216 = vadd.f32 %v214, %v215
    %v217 = vrot.slane %v216, 1
    %v218 = vadd.f32 %v216, %v217
    %v219 = vrot.slane %v186, 4
    %v220 = vadd.f32 %v186, %v219
    %v221 = vrot.slane %v220, 2
    %v222 = vadd.f32 %v220, %v221
    %v223 = vrot.slane %v222, 1
    %v224 = vadd.f32 %v222, %v223
    %v225 = vrot.slane %v187, 4
    %v226 = vadd.f32 %v187, %v225
    %v227 = vrot.slane %v226, 2
    %v228 = vadd.f32 %v226, %v227
    %v229 = vrot.slane %v228, 1
    %v230 = vadd.f32 %v228, %v229
    %v231 = vrot.slane %v188, 4
    %v232 = vadd.f32 %v188, %v231
    %v233 = vrot.slane %v232, 2
    %v234 = vadd.f32 %v232, %v233
    %v235 = vrot.slane %v234, 1
    %v236 = vadd.f32 %v234, %v235
    %p237 = scmp.eq.s32.totalorder 0, 0
    // Predicated region
    $region58: #{projection_forward.1} parent=1 // pred_check
      %p238 = pneg %p237
    $region59: #{projection_forward.1} parent=1 // pred_check_branch
      %240 = sbr.rel (%p238) target = $region61
    $region60: #{projection_forward.1} parent=1 // pred_region
      %241 = vst [vmem:[#allocation13] sm:$0xff] 0.0
      %242 = vst [vmem:[#allocation14] sm:$0xff] 0.0
    $region61: #{projection_forward.1} parent=1 // pred_fallthru
      _
    %v243 = vld [vmem:[#allocation13] sm:$0xff]
    %v252 = vrot.slane %v144, 4
    %v253 = vrot.slane %v156, 4
    %v254 = vrot.slane %v168, 4
    %v255 = vrot.slane %v180, 4
    %vm256 = vcmask 1043456
    %v257 = vsel %vm256, %v138, %v252
    %v258 = vsel %vm256, %v150, %v253
    %v259 = vsel %vm256, %v162, %v254
    %v260 = vsel %vm256, %v174, %v255
    %v261 = vrot.slane %v258, 7
    %vm262 = vcmask 1041409
    %v263 = vsel %vm262, %v261, %v257
    %vm264 = vcmask 1045509
    %v265 = vsel %vm264, %v261, %v263
    %v266 = vrot.slane %v259, 6
    %vm267 = vcmask 1042434
    %v268 = vsel %vm267, %v266, %v265
    %vm269 = vcmask 1046534
    %v270 = vsel %vm269, %v266, %v268
    %v271 = vrot.slane %v260, 5
    %vm272 = vcmask 1043459
    %v273 = vsel %vm272, %v271, %v270
    %vm274 = vcmask 1047559
    %v275 = vsel %vm274, %v271, %v273
    %v277 = vadd.f32 %v243, %v275
    %278 = vst [vmem:[#allocation13] sm:$0xff] %v277
    %v279 = vld [vmem:[#allocation14] sm:$0xff]
    %v288 = vrot.slane %v200, 4
    %v289 = vrot.slane %v212, 4
    %v290 = vrot.slane %v224, 4
    %v291 = vrot.slane %v236, 4
    %v292 = vsel %vm256, %v194, %v288
    %v293 = vsel %vm256, %v206, %v289
    %v294 = vsel %vm256, %v218, %v290
    %v295 = vsel %vm256, %v230, %v291
    %v296 = vrot.slane %v293, 7
    %v297 = vsel %vm262, %v296, %v292
    %v298 = vsel %vm264, %v296, %v297
    %v299 = vrot.slane %v294, 6
    %v300 = vsel %vm267, %v299, %v298
    %v301 = vsel %vm269, %v299, %v300
    %v302 = vrot.slane %v295, 5
    %v303 = vsel %vm272, %v302, %v301
    %v304 = vsel %vm274, %v302, %v303
    %v306 = vadd.f32 %v279, %v304
    %307 = vst [vmem:[#allocation14] sm:$0xff] %v306
    // Predicated region
    $region62: #{projection_forward.1} parent=1 // pred_check
      %p308 = pneg %p237
    $region63: #{projection_forward.1} parent=1 // pred_check_branch
      %310 = sbr.rel (%p308) target = $region65
    $region64: #{projection_forward.1} parent=1 // pred_region
      %v311 = vld [vmem:[#allocation13] sm:$0xff]
      %v312 = vmul.f32 %v311, 0.125
      %313 = vst [vmem:[#allocation13] sm:$0xff] %v312
      %v314 = vld [vmem:[#allocation14] sm:$0xff]
      %v315 = vmul.f32 %v314, 0.125
      %v316 = vld [vmem:[#allocation7] sm:$0xff]
      %v317 = vld [vmem:[#allocation7 + $0x8] sm:$0xff]
      %v318 = vld [vmem:[#allocation7 + $0x10] sm:$0xff]
      %v319 = vld [vmem:[#allocation7 + $0x18] sm:$0xff]
      %v320 = vld [vmem:[#allocation7 + $0x20] sm:$0xff]
      %v321 = vld [vmem:[#allocation7 + $0x28] sm:$0xff]
      %v322 = vld [vmem:[#allocation7 + $0x30] sm:$0xff]
      %v323 = vld [vmem:[#allocation7 + $0x38] sm:$0xff]
      %v324 = vld [vmem:[#allocation7 + $0x40] sm:$0xff]
      %v325 = vld [vmem:[#allocation7 + $0x48] sm:$0xff]
      %v326 = vld [vmem:[#allocation7 + $0x50] sm:$0xff]
      %v327 = vld [vmem:[#allocation7 + $0x58] sm:$0xff]
      %v328 = vld [vmem:[#allocation7 + $0x60] sm:$0xff]
      %v329 = vld [vmem:[#allocation7 + $0x68] sm:$0xff]
      %v330 = vld [vmem:[#allocation7 + $0x70] sm:$0xff]
      %v331 = vld [vmem:[#allocation7 + $0x78] sm:$0xff]
      %v332 = vld [vmem:[#allocation7 + $0x80] sm:$0xff]
      %v333 = vld [vmem:[#allocation7 + $0x88] sm:$0xff]
      %v334 = vld [vmem:[#allocation7 + $0x90] sm:$0xff]
      %v335 = vld [vmem:[#allocation7 + $0x98] sm:$0xff]
      %v336 = vld [vmem:[#allocation7 + $0xa0] sm:$0xff]
      %v337 = vld [vmem:[#allocation7 + $0xa8] sm:$0xff]
      %v338 = vld [vmem:[#allocation7 + $0xb0] sm:$0xff]
      %v339 = vld [vmem:[#allocation7 + $0xb8] sm:$0xff]
      %v340 = vld [vmem:[#allocation7 + $0xc0] sm:$0xff]
      %v341 = vld [vmem:[#allocation7 + $0xc8] sm:$0xff]
      %v342 = vld [vmem:[#allocation7 + $0xd0] sm:$0xff]
      %v343 = vld [vmem:[#allocation7 + $0xd8] sm:$0xff]
      %v344 = vld [vmem:[#allocation7 + $0xe0] sm:$0xff]
      %v345 = vld [vmem:[#allocation7 + $0xe8] sm:$0xff]
      %v346 = vld [vmem:[#allocation7 + $0xf0] sm:$0xff]
      %v347 = vld [vmem:[#allocation7 + $0xf8] sm:$0xff]
      %v348 = vld [vmem:[#allocation7 + $0x100] sm:$0xff]
      %v349 = vld [vmem:[#allocation7 + $0x108] sm:$0xff]
      %v350 = vld [vmem:[#allocation7 + $0x110] sm:$0xff]
      %v351 = vld [vmem:[#allocation7 + $0x118] sm:$0xff]
      %v352 = vld [vmem:[#allocation7 + $0x120] sm:$0xff]
      %v353 = vld [vmem:[#allocation7 + $0x128] sm:$0xff]
      %v354 = vld [vmem:[#allocation7 + $0x130] sm:$0xff]
      %v355 = vld [vmem:[#allocation7 + $0x138] sm:$0xff]
      %v356 = vld [vmem:[#allocation7 + $0x140] sm:$0xff]
      %v357 = vld [vmem:[#allocation7 + $0x148] sm:$0xff]
      %v358 = vld [vmem:[#allocation7 + $0x150] sm:$0xff]
      %v359 = vld [vmem:[#allocation7 + $0x158] sm:$0xff]
      %v360 = vld [vmem:[#allocation7 + $0x160] sm:$0xff]
      %v361 = vld [vmem:[#allocation7 + $0x168] sm:$0xff]
      %v362 = vld [vmem:[#allocation7 + $0x170] sm:$0xff]
      %v363 = vld [vmem:[#allocation7 + $0x178] sm:$0xff]
      %v364 = vld [vmem:[#allocation7 + $0x180] sm:$0xff]
      %v365 = vld [vmem:[#allocation7 + $0x188] sm:$0xff]
      %v366 = vld [vmem:[#allocation7 + $0x190] sm:$0xff]
      %v367 = vld [vmem:[#allocation7 + $0x198] sm:$0xff]
      %v368 = vld [vmem:[#allocation7 + $0x1a0] sm:$0xff]
      %v369 = vld [vmem:[#allocation7 + $0x1a8] sm:$0xff]
      %v370 = vld [vmem:[#allocation7 + $0x1b0] sm:$0xff]
      %v371 = vld [vmem:[#allocation7 + $0x1b8] sm:$0xff]
      %v372 = vld [vmem:[#allocation7 + $0x1c0] sm:$0xff]
      %v373 = vld [vmem:[#allocation7 + $0x1c8] sm:$0xff]
      %v374 = vld [vmem:[#allocation7 + $0x1d0] sm:$0xff]
      %v375 = vld [vmem:[#allocation7 + $0x1d8] sm:$0xff]
      %v376 = vld [vmem:[#allocation7 + $0x1e0] sm:$0xff]
      %v377 = vld [vmem:[#allocation7 + $0x1e8] sm:$0xff]
      %v378 = vld [vmem:[#allocation7 + $0x1f0] sm:$0xff]
      %v379 = vld [vmem:[#allocation7 + $0x1f8] sm:$0xff]
      %v380 = vld [vmem:[#allocation7 + $0x200] sm:$0xff]
      %v381 = vld [vmem:[#allocation7 + $0x208] sm:$0xff]
      %v382 = vld [vmem:[#allocation7 + $0x210] sm:$0xff]
      %v383 = vld [vmem:[#allocation7 + $0x218] sm:$0xff]
      %v384 = vld [vmem:[#allocation7 + $0x220] sm:$0xff]
      %v385 = vld [vmem:[#allocation7 + $0x228] sm:$0xff]
      %v386 = vld [vmem:[#allocation7 + $0x230] sm:$0xff]
      %v387 = vld [vmem:[#allocation7 + $0x238] sm:$0xff]
      %v388 = vld [vmem:[#allocation7 + $0x240] sm:$0xff]
      %v389 = vld [vmem:[#allocation7 + $0x248] sm:$0xff]
      %v390 = vld [vmem:[#allocation7 + $0x250] sm:$0xff]
      %v391 = vld [vmem:[#allocation7 + $0x258] sm:$0xff]
      %v392 = vld [vmem:[#allocation7 + $0x260] sm:$0xff]
      %v393 = vld [vmem:[#allocation7 + $0x268] sm:$0xff]
      %v394 = vld [vmem:[#allocation7 + $0x270] sm:$0xff]
      %v395 = vld [vmem:[#allocation7 + $0x278] sm:$0xff]
      %v396 = vld [vmem:[#allocation7 + $0x280] sm:$0xff]
      %v397 = vld [vmem:[#allocation7 + $0x288] sm:$0xff]
      %v398 = vld [vmem:[#allocation7 + $0x290] sm:$0xff]
      %v399 = vld [vmem:[#allocation7 + $0x298] sm:$0xff]
      %v400 = vld [vmem:[#allocation7 + $0x2a0] sm:$0xff]
      %v401 = vld [vmem:[#allocation7 + $0x2a8] sm:$0xff]
      %v402 = vld [vmem:[#allocation7 + $0x2b0] sm:$0xff]
      %v403 = vld [vmem:[#allocation7 + $0x2b8] sm:$0xff]
      %v404 = vld [vmem:[#allocation7 + $0x2c0] sm:$0xff]
      %v405 = vld [vmem:[#allocation7 + $0x2c8] sm:$0xff]
      %v406 = vld [vmem:[#allocation7 + $0x2d0] sm:$0xff]
      %v407 = vld [vmem:[#allocation7 + $0x2d8] sm:$0xff]
      %v408 = vld [vmem:[#allocation7 + $0x2e0] sm:$0xff]
      %v409 = vld [vmem:[#allocation7 + $0x2e8] sm:$0xff]
      %v410 = vld [vmem:[#allocation7 + $0x2f0] sm:$0xff]
      %v411 = vld [vmem:[#allocation7 + $0x2f8] sm:$0xff]
      %v412 = vld [vmem:[#allocation7 + $0x300] sm:$0xff]
      %v413 = vld [vmem:[#allocation7 + $0x308] sm:$0xff]
      %v414 = vld [vmem:[#allocation7 + $0x310] sm:$0xff]
      %v415 = vld [vmem:[#allocation7 + $0x318] sm:$0xff]
      %v416 = vld [vmem:[#allocation7 + $0x320] sm:$0xff]
      %v417 = vld [vmem:[#allocation7 + $0x328] sm:$0xff]
      %v418 = vld [vmem:[#allocation7 + $0x330] sm:$0xff]
      %v419 = vld [vmem:[#allocation7 + $0x338] sm:$0xff]
      %v420 = vld [vmem:[#allocation7 + $0x340] sm:$0xff]
      %v421 = vld [vmem:[#allocation7 + $0x348] sm:$0xff]
      %v422 = vld [vmem:[#allocation7 + $0x350] sm:$0xff]
      %v423 = vld [vmem:[#allocation7 + $0x358] sm:$0xff]
      %v424 = vld [vmem:[#allocation7 + $0x360] sm:$0xff]
      %v425 = vld [vmem:[#allocation7 + $0x368] sm:$0xff]
      %v426 = vld [vmem:[#allocation7 + $0x370] sm:$0xff]
      %v427 = vld [vmem:[#allocation7 + $0x378] sm:$0xff]
      %v428 = vld [vmem:[#allocation7 + $0x380] sm:$0xff]
      %v429 = vld [vmem:[#allocation7 + $0x388] sm:$0xff]
      %v430 = vld [vmem:[#allocation7 + $0x390] sm:$0xff]
      %v431 = vld [vmem:[#allocation7 + $0x398] sm:$0xff]
      %v432 = vld [vmem:[#allocation7 + $0x3a0] sm:$0xff]
      %v433 = vld [vmem:[#allocation7 + $0x3a8] sm:$0xff]
      %v434 = vld [vmem:[#allocation7 + $0x3b0] sm:$0xff]
      %v435 = vld [vmem:[#allocation7 + $0x3b8] sm:$0xff]
      %v436 = vld [vmem:[#allocation7 + $0x3c0] sm:$0xff]
      %v437 = vld [vmem:[#allocation7 + $0x3c8] sm:$0xff]
      %v438 = vld [vmem:[#allocation7 + $0x3d0] sm:$0xff]
      %v439 = vld [vmem:[#allocation7 + $0x3d8] sm:$0xff]
      %v440 = vld [vmem:[#allocation7 + $0x3e0] sm:$0xff]
      %v441 = vld [vmem:[#allocation7 + $0x3e8] sm:$0xff]
      %v442 = vld [vmem:[#allocation7 + $0x3f0] sm:$0xff]
      %v443 = vld [vmem:[#allocation7 + $0x3f8] sm:$0xff]
      %v444 = vld [vmem:[#allocation8] sm:$0xf]
      %v446 = vperm.slane %v444, 0
      %v447 = vperm.slane %v444, 1
      %v448 = vperm.slane %v444, 2
      %v449 = vperm.slane %v444, 3
      %455 = vst [vmem:[#allocation1] ss:$2 sm:$0xff] %v315
      %v456 = vld.sshfl [vmem:[#allocation1] sm:$0xff pattern:$0x75316420]
      %v457 = vld.sshfl [vmem:[#allocation1 + $0x8] sm:$0xff pattern:$0x75316420]
      %460 = vmatpush.msra.mxu0 %v376
      %461 = vmatpush.msra.mxu0 %v372
      %462 = vmatpush.msra.mxu0 %v368
      %463 = vmatpush.msra.mxu0 %v364
      %464 = vmatpush.msra.mxu0 %v360
      %465 = vmatpush.msra.mxu0 %v356
      %466 = vmatpush.msra.mxu0 %v352
      %467 = vmatpush.msra.mxu0 %v348
      %468 = vmatpush.msra.mxu0 %v344
      %469 = vmatpush.msra.mxu0 %v340
      %470 = vmatpush.msra.mxu0 %v336
      %471 = vmatpush.msra.mxu0 %v332
      %472 = vmatpush.msra.mxu0 %v328
      %473 = vmatpush.msra.mxu0 %v324
      %474 = vmatpush.msra.mxu0 %v320
      %475 = vmatpush.msra.mxu0 %v316
      %476 = vmatmul.f32.gmra.mxu0 %v456
      %v477 = vpop.f32.mrf.mxu0
      %v478 = vadd.f32 %v446, %v477
      %479 = vdwg.mxu0
      %480 = vmatpush.msra.mxu0 %v440
      %481 = vmatpush.msra.mxu0 %v436
      %482 = vmatpush.msra.mxu0 %v432
      %483 = vmatpush.msra.mxu0 %v428
      %484 = vmatpush.msra.mxu0 %v424
      %485 = vmatpush.msra.mxu0 %v420
      %486 = vmatpush.msra.mxu0 %v416
      %487 = vmatpush.msra.mxu0 %v412
      %488 = vmatpush.msra.mxu0 %v408
      %489 = vmatpush.msra.mxu0 %v404
      %490 = vmatpush.msra.mxu0 %v400
      %491 = vmatpush.msra.mxu0 %v396
      %492 = vmatpush.msra.mxu0 %v392
      %493 = vmatpush.msra.mxu0 %v388
      %494 = vmatpush.msra.mxu0 %v384
      %495 = vmatpush.msra.mxu0 %v380
      %496 = vmatmul.f32.gmra.mxu0 %v457
      %v497 = vpop.f32.mrf.mxu0
      %v498 = vadd.f32 %v478, %v497
      %499 = vdwg.mxu0
      %500 = vmatpush.msra.mxu0 %v377
      %501 = vmatpush.msra.mxu0 %v373
      %502 = vmatpush.msra.mxu0 %v369
      %503 = vmatpush.msra.mxu0 %v365
      %504 = vmatpush.msra.mxu0 %v361
      %505 = vmatpush.msra.mxu0 %v357
      %506 = vmatpush.msra.mxu0 %v353
      %507 = vmatpush.msra.mxu0 %v349
      %508 = vmatpush.msra.mxu0 %v345
      %509 = vmatpush.msra.mxu0 %v341
      %510 = vmatpush.msra.mxu0 %v337
      %511 = vmatpush.msra.mxu0 %v333
      %512 = vmatpush.msra.mxu0 %v329
      %513 = vmatpush.msra.mxu0 %v325
      %514 = vmatpush.msra.mxu0 %v321
      %515 = vmatpush.msra.mxu0 %v317
      %516 = vmatmul.f32.gmra.mxu0 %v456
      %v517 = vpop.f32.mrf.mxu0
      %v518 = vadd.f32 %v447, %v517
      %519 = vdwg.mxu0
      %520 = vmatpush.msra.mxu0 %v441
      %521 = vmatpush.msra.mxu0 %v437
      %522 = vmatpush.msra.mxu0 %v433
      %523 = vmatpush.msra.mxu0 %v429
      %524 = vmatpush.msra.mxu0 %v425
      %525 = vmatpush.msra.mxu0 %v421
      %526 = vmatpush.msra.mxu0 %v417
      %527 = vmatpush.msra.mxu0 %v413
      %528 = vmatpush.msra.mxu0 %v409
      %529 = vmatpush.msra.mxu0 %v405
      %530 = vmatpush.msra.mxu0 %v401
      %531 = vmatpush.msra.mxu0 %v397
      %532 = vmatpush.msra.mxu0 %v393
      %533 = vmatpush.msra.mxu0 %v389
      %534 = vmatpush.msra.mxu0 %v385
      %535 = vmatpush.msra.mxu0 %v381
      %536 = vmatmul.f32.gmra.mxu0 %v457
      %v537 = vpop.f32.mrf.mxu0
      %v538 = vadd.f32 %v518, %v537
      %539 = vdwg.mxu0
      %540 = vmatpush.msra.mxu0 %v378
      %541 = vmatpush.msra.mxu0 %v374
      %542 = vmatpush.msra.mxu0 %v370
      %543 = vmatpush.msra.mxu0 %v366
      %544 = vmatpush.msra.mxu0 %v362
      %545 = vmatpush.msra.mxu0 %v358
      %546 = vmatpush.msra.mxu0 %v354
      %547 = vmatpush.msra.mxu0 %v350
      %548 = vmatpush.msra.mxu0 %v346
      %549 = vmatpush.msra.mxu0 %v342
      %550 = vmatpush.msra.mxu0 %v338
      %551 = vmatpush.msra.mxu0 %v334
      %552 = vmatpush.msra.mxu0 %v330
      %553 = vmatpush.msra.mxu0 %v326
      %554 = vmatpush.msra.mxu0 %v322
      %555 = vmatpush.msra.mxu0 %v318
      %556 = vmatmul.f32.gmra.mxu0 %v456
      %v557 = vpop.f32.mrf.mxu0
      %v558 = vadd.f32 %v448, %v557
      %559 = vdwg.mxu0
      %560 = vmatpush.msra.mxu0 %v442
      %561 = vmatpush.msra.mxu0 %v438
      %562 = vmatpush.msra.mxu0 %v434
      %563 = vmatpush.msra.mxu0 %v430
      %564 = vmatpush.msra.mxu0 %v426
      %565 = vmatpush.msra.mxu0 %v422
      %566 = vmatpush.msra.mxu0 %v418
      %567 = vmatpush.msra.mxu0 %v414
      %568 = vmatpush.msra.mxu0 %v410
      %569 = vmatpush.msra.mxu0 %v406
      %570 = vmatpush.msra.mxu0 %v402
      %571 = vmatpush.msra.mxu0 %v398
      %572 = vmatpush.msra.mxu0 %v394
      %573 = vmatpush.msra.mxu0 %v390
      %574 = vmatpush.msra.mxu0 %v386
      %575 = vmatpush.msra.mxu0 %v382
      %576 = vmatmul.f32.gmra.mxu0 %v457
      %v577 = vpop.f32.mrf.mxu0
      %v578 = vadd.f32 %v558, %v577
      %579 = vdwg.mxu0
      %580 = vmatpush.msra.mxu0 %v379
      %581 = vmatpush.msra.mxu0 %v375
      %582 = vmatpush.msra.mxu0 %v371
      %583 = vmatpush.msra.mxu0 %v367
      %584 = vmatpush.msra.mxu0 %v363
      %585 = vmatpush.msra.mxu0 %v359
      %586 = vmatpush.msra.mxu0 %v355
      %587 = vmatpush.msra.mxu0 %v351
      %588 = vmatpush.msra.mxu0 %v347
      %589 = vmatpush.msra.mxu0 %v343
      %590 = vmatpush.msra.mxu0 %v339
      %591 = vmatpush.msra.mxu0 %v335
      %592 = vmatpush.msra.mxu0 %v331
      %593 = vmatpush.msra.mxu0 %v327
      %594 = vmatpush.msra.mxu0 %v323
      %595 = vmatpush.msra.mxu0 %v319
      %596 = vmatmul.f32.gmra.mxu0 %v456
      %v597 = vpop.f32.mrf.mxu0
      %v598 = vadd.f32 %v449, %v597
      %599 = vdwg.mxu0
      %600 = vmatpush.msra.mxu0 %v443
      %601 = vmatpush.msra.mxu0 %v439
      %602 = vmatpush.msra.mxu0 %v435
      %603 = vmatpush.msra.mxu0 %v431
      %604 = vmatpush.msra.mxu0 %v427
      %605 = vmatpush.msra.mxu0 %v423
      %606 = vmatpush.msra.mxu0 %v419
      %607 = vmatpush.msra.mxu0 %v415
      %608 = vmatpush.msra.mxu0 %v411
      %609 = vmatpush.msra.mxu0 %v407
      %610 = vmatpush.msra.mxu0 %v403
      %611 = vmatpush.msra.mxu0 %v399
      %612 = vmatpush.msra.mxu0 %v395
      %613 = vmatpush.msra.mxu0 %v391
      %614 = vmatpush.msra.mxu0 %v387
      %615 = vmatpush.msra.mxu0 %v383
      %616 = vmatmul.f32.gmra.mxu0 %v457
      %v617 = vpop.f32.mrf.mxu0
      %v618 = vadd.f32 %v598, %v617
      %619 = vdwg.mxu0
      %v620 = vmax.f32 %v498, 0.0
      %v621 = vmax.f32 %v538, 0.0
      %v622 = vmax.f32 %v578, 0.0
      %v623 = vmax.f32 %v618, 0.0
      %v624 = vld [vmem:[#allocation10] sm:$0xff]
      %v625 = vld [vmem:[#allocation10 + $0x8] sm:$0xff]
      %v626 = vld [vmem:[#allocation10 + $0x10] sm:$0xff]
      %v627 = vld [vmem:[#allocation10 + $0x18] sm:$0xff]
      %v628 = vld [vmem:[#allocation10 + $0x20] sm:$0xff]
      %v629 = vld [vmem:[#allocation10 + $0x28] sm:$0xff]
      %v630 = vld [vmem:[#allocation10 + $0x30] sm:$0xff]
      %v631 = vld [vmem:[#allocation10 + $0x38] sm:$0xff]
      %v632 = vld [vmem:[#allocation10 + $0x40] sm:$0xff]
      %v633 = vld [vmem:[#allocation10 + $0x48] sm:$0xff]
      %v634 = vld [vmem:[#allocation10 + $0x50] sm:$0xff]
      %v635 = vld [vmem:[#allocation10 + $0x58] sm:$0xff]
      %v636 = vld [vmem:[#allocation10 + $0x60] sm:$0xff]
      %v637 = vld [vmem:[#allocation10 + $0x68] sm:$0xff]
      %v638 = vld [vmem:[#allocation10 + $0x70] sm:$0xff]
      %v639 = vld [vmem:[#allocation10 + $0x78] sm:$0xff]
      %v640 = vld [vmem:[#allocation10 + $0x80] sm:$0xff]
      %v641 = vld [vmem:[#allocation10 + $0x88] sm:$0xff]
      %v642 = vld [vmem:[#allocation10 + $0x90] sm:$0xff]
      %v643 = vld [vmem:[#allocation10 + $0x98] sm:$0xff]
      %v644 = vld [vmem:[#allocation10 + $0xa0] sm:$0xff]
      %v645 = vld [vmem:[#allocation10 + $0xa8] sm:$0xff]
      %v646 = vld [vmem:[#allocation10 + $0xb0] sm:$0xff]
      %v647 = vld [vmem:[#allocation10 + $0xb8] sm:$0xff]
      %v648 = vld [vmem:[#allocation10 + $0xc0] sm:$0xff]
      %v649 = vld [vmem:[#allocation10 + $0xc8] sm:$0xff]
      %v650 = vld [vmem:[#allocation10 + $0xd0] sm:$0xff]
      %v651 = vld [vmem:[#allocation10 + $0xd8] sm:$0xff]
      %v652 = vld [vmem:[#allocation10 + $0xe0] sm:$0xff]
      %v653 = vld [vmem:[#allocation10 + $0xe8] sm:$0xff]
      %v654 = vld [vmem:[#allocation10 + $0xf0] sm:$0xff]
      %v655 = vld [vmem:[#allocation10 + $0xf8] sm:$0xff]
      %v656 = vld [vmem:[#allocation10 + $0x100] sm:$0xff]
      %v657 = vld [vmem:[#allocation10 + $0x108] sm:$0xff]
      %v658 = vld [vmem:[#allocation10 + $0x110] sm:$0xff]
      %v659 = vld [vmem:[#allocation10 + $0x118] sm:$0xff]
      %v660 = vld [vmem:[#allocation10 + $0x120] sm:$0xff]
      %v661 = vld [vmem:[#allocation10 + $0x128] sm:$0xff]
      %v662 = vld [vmem:[#allocation10 + $0x130] sm:$0xff]
      %v663 = vld [vmem:[#allocation10 + $0x138] sm:$0xff]
      %v664 = vld [vmem:[#allocation10 + $0x140] sm:$0xff]
      %v665 = vld [vmem:[#allocation10 + $0x148] sm:$0xff]
      %v666 = vld [vmem:[#allocation10 + $0x150] sm:$0xff]
      %v667 = vld [vmem:[#allocation10 + $0x158] sm:$0xff]
      %v668 = vld [vmem:[#allocation10 + $0x160] sm:$0xff]
      %v669 = vld [vmem:[#allocation10 + $0x168] sm:$0xff]
      %v670 = vld [vmem:[#allocation10 + $0x170] sm:$0xff]
      %v671 = vld [vmem:[#allocation10 + $0x178] sm:$0xff]
      %v672 = vld [vmem:[#allocation10 + $0x180] sm:$0xff]
      %v673 = vld [vmem:[#allocation10 + $0x188] sm:$0xff]
      %v674 = vld [vmem:[#allocation10 + $0x190] sm:$0xff]
      %v675 = vld [vmem:[#allocation10 + $0x198] sm:$0xff]
      %v676 = vld [vmem:[#allocation10 + $0x1a0] sm:$0xff]
      %v677 = vld [vmem:[#allocation10 + $0x1a8] sm:$0xff]
      %v678 = vld [vmem:[#allocation10 + $0x1b0] sm:$0xff]
      %v679 = vld [vmem:[#allocation10 + $0x1b8] sm:$0xff]
      %v680 = vld [vmem:[#allocation10 + $0x1c0] sm:$0xff]
      %v681 = vld [vmem:[#allocation10 + $0x1c8] sm:$0xff]
      %v682 = vld [vmem:[#allocation10 + $0x1d0] sm:$0xff]
      %v683 = vld [vmem:[#allocation10 + $0x1d8] sm:$0xff]
      %v684 = vld [vmem:[#allocation10 + $0x1e0] sm:$0xff]
      %v685 = vld [vmem:[#allocation10 + $0x1e8] sm:$0xff]
      %v686 = vld [vmem:[#allocation10 + $0x1f0] sm:$0xff]
      %v687 = vld [vmem:[#allocation10 + $0x1f8] sm:$0xff]
      %v688 = vld [vmem:[#allocation10 + $0x200] sm:$0xff]
      %v689 = vld [vmem:[#allocation10 + $0x208] sm:$0xff]
      %v690 = vld [vmem:[#allocation10 + $0x210] sm:$0xff]
      %v691 = vld [vmem:[#allocation10 + $0x218] sm:$0xff]
      %v692 = vld [vmem:[#allocation10 + $0x220] sm:$0xff]
      %v693 = vld [vmem:[#allocation10 + $0x228] sm:$0xff]
      %v694 = vld [vmem:[#allocation10 + $0x230] sm:$0xff]
      %v695 = vld [vmem:[#allocation10 + $0x238] sm:$0xff]
      %v696 = vld [vmem:[#allocation10 + $0x240] sm:$0xff]
      %v697 = vld [vmem:[#allocation10 + $0x248] sm:$0xff]
      %v698 = vld [vmem:[#allocation10 + $0x250] sm:$0xff]
      %v699 = vld [vmem:[#allocation10 + $0x258] sm:$0xff]
      %v700 = vld [vmem:[#allocation10 + $0x260] sm:$0xff]
      %v701 = vld [vmem:[#allocation10 + $0x268] sm:$0xff]
      %v702 = vld [vmem:[#allocation10 + $0x270] sm:$0xff]
      %v703 = vld [vmem:[#allocation10 + $0x278] sm:$0xff]
      %v704 = vld [vmem:[#allocation10 + $0x280] sm:$0xff]
      %v705 = vld [vmem:[#allocation10 + $0x288] sm:$0xff]
      %v706 = vld [vmem:[#allocation10 + $0x290] sm:$0xff]
      %v707 = vld [vmem:[#allocation10 + $0x298] sm:$0xff]
      %v708 = vld [vmem:[#allocation10 + $0x2a0] sm:$0xff]
      %v709 = vld [vmem:[#allocation10 + $0x2a8] sm:$0xff]
      %v710 = vld [vmem:[#allocation10 + $0x2b0] sm:$0xff]
      %v711 = vld [vmem:[#allocation10 + $0x2b8] sm:$0xff]
      %v712 = vld [vmem:[#allocation10 + $0x2c0] sm:$0xff]
      %v713 = vld [vmem:[#allocation10 + $0x2c8] sm:$0xff]
      %v714 = vld [vmem:[#allocation10 + $0x2d0] sm:$0xff]
      %v715 = vld [vmem:[#allocation10 + $0x2d8] sm:$0xff]
      %v716 = vld [vmem:[#allocation10 + $0x2e0] sm:$0xff]
      %v717 = vld [vmem:[#allocation10 + $0x2e8] sm:$0xff]
      %v718 = vld [vmem:[#allocation10 + $0x2f0] sm:$0xff]
      %v719 = vld [vmem:[#allocation10 + $0x2f8] sm:$0xff]
      %v720 = vld [vmem:[#allocation10 + $0x300] sm:$0xff]
      %v721 = vld [vmem:[#allocation10 + $0x308] sm:$0xff]
      %v722 = vld [vmem:[#allocation10 + $0x310] sm:$0xff]
      %v723 = vld [vmem:[#allocation10 + $0x318] sm:$0xff]
      %v724 = vld [vmem:[#allocation10 + $0x320] sm:$0xff]
      %v725 = vld [vmem:[#allocation10 + $0x328] sm:$0xff]
      %v726 = vld [vmem:[#allocation10 + $0x330] sm:$0xff]
      %v727 = vld [vmem:[#allocation10 + $0x338] sm:$0xff]
      %v728 = vld [vmem:[#allocation10 + $0x340] sm:$0xff]
      %v729 = vld [vmem:[#allocation10 + $0x348] sm:$0xff]
      %v730 = vld [vmem:[#allocation10 + $0x350] sm:$0xff]
      %v731 = vld [vmem:[#allocation10 + $0x358] sm:$0xff]
      %v732 = vld [vmem:[#allocation10 + $0x360] sm:$0xff]
      %v733 = vld [vmem:[#allocation10 + $0x368] sm:$0xff]
      %v734 = vld [vmem:[#allocation10 + $0x370] sm:$0xff]
      %v735 = vld [vmem:[#allocation10 + $0x378] sm:$0xff]
      %v736 = vld [vmem:[#allocation10 + $0x380] sm:$0xff]
      %v737 = vld [vmem:[#allocation10 + $0x388] sm:$0xff]
      %v738 = vld [vmem:[#allocation10 + $0x390] sm:$0xff]
      %v739 = vld [vmem:[#allocation10 + $0x398] sm:$0xff]
      %v740 = vld [vmem:[#allocation10 + $0x3a0] sm:$0xff]
      %v741 = vld [vmem:[#allocation10 + $0x3a8] sm:$0xff]
      %v742 = vld [vmem:[#allocation10 + $0x3b0] sm:$0xff]
      %v743 = vld [vmem:[#allocation10 + $0x3b8] sm:$0xff]
      %v744 = vld [vmem:[#allocation10 + $0x3c0] sm:$0xff]
      %v745 = vld [vmem:[#allocation10 + $0x3c8] sm:$0xff]
      %v746 = vld [vmem:[#allocation10 + $0x3d0] sm:$0xff]
      %v747 = vld [vmem:[#allocation10 + $0x3d8] sm:$0xff]
      %v748 = vld [vmem:[#allocation10 + $0x3e0] sm:$0xff]
      %v749 = vld [vmem:[#allocation10 + $0x3e8] sm:$0xff]
      %v750 = vld [vmem:[#allocation10 + $0x3f0] sm:$0xff]
      %v751 = vld [vmem:[#allocation10 + $0x3f8] sm:$0xff]
      %v752 = vld [vmem:[#allocation10 + $0x400] sm:$0xff]
      %v753 = vld [vmem:[#allocation10 + $0x408] sm:$0xff]
      %v754 = vld [vmem:[#allocation10 + $0x410] sm:$0xff]
      %v755 = vld [vmem:[#allocation10 + $0x418] sm:$0xff]
      %v756 = vld [vmem:[#allocation10 + $0x420] sm:$0xff]
      %v757 = vld [vmem:[#allocation10 + $0x428] sm:$0xff]
      %v758 = vld [vmem:[#allocation10 + $0x430] sm:$0xff]
      %v759 = vld [vmem:[#allocation10 + $0x438] sm:$0xff]
      %v760 = vld [vmem:[#allocation10 + $0x440] sm:$0xff]
      %v761 = vld [vmem:[#allocation10 + $0x448] sm:$0xff]
      %v762 = vld [vmem:[#allocation10 + $0x450] sm:$0xff]
      %v763 = vld [vmem:[#allocation10 + $0x458] sm:$0xff]
      %v764 = vld [vmem:[#allocation10 + $0x460] sm:$0xff]
      %v765 = vld [vmem:[#allocation10 + $0x468] sm:$0xff]
      %v766 = vld [vmem:[#allocation10 + $0x470] sm:$0xff]
      %v767 = vld [vmem:[#allocation10 + $0x478] sm:$0xff]
      %v768 = vld [vmem:[#allocation10 + $0x480] sm:$0xff]
      %v769 = vld [vmem:[#allocation10 + $0x488] sm:$0xff]
      %v770 = vld [vmem:[#allocation10 + $0x490] sm:$0xff]
      %v771 = vld [vmem:[#allocation10 + $0x498] sm:$0xff]
      %v772 = vld [vmem:[#allocation10 + $0x4a0] sm:$0xff]
      %v773 = vld [vmem:[#allocation10 + $0x4a8] sm:$0xff]
      %v774 = vld [vmem:[#allocation10 + $0x4b0] sm:$0xff]
      %v775 = vld [vmem:[#allocation10 + $0x4b8] sm:$0xff]
      %v776 = vld [vmem:[#allocation10 + $0x4c0] sm:$0xff]
      %v777 = vld [vmem:[#allocation10 + $0x4c8] sm:$0xff]
      %v778 = vld [vmem:[#allocation10 + $0x4d0] sm:$0xff]
      %v779 = vld [vmem:[#allocation10 + $0x4d8] sm:$0xff]
      %v780 = vld [vmem:[#allocation10 + $0x4e0] sm:$0xff]
      %v781 = vld [vmem:[#allocation10 + $0x4e8] sm:$0xff]
      %v782 = vld [vmem:[#allocation10 + $0x4f0] sm:$0xff]
      %v783 = vld [vmem:[#allocation10 + $0x4f8] sm:$0xff]
      %v784 = vld [vmem:[#allocation10 + $0x500] sm:$0xff]
      %v785 = vld [vmem:[#allocation10 + $0x508] sm:$0xff]
      %v786 = vld [vmem:[#allocation10 + $0x510] sm:$0xff]
      %v787 = vld [vmem:[#allocation10 + $0x518] sm:$0xff]
      %v788 = vld [vmem:[#allocation10 + $0x520] sm:$0xff]
      %v789 = vld [vmem:[#allocation10 + $0x528] sm:$0xff]
      %v790 = vld [vmem:[#allocation10 + $0x530] sm:$0xff]
      %v791 = vld [vmem:[#allocation10 + $0x538] sm:$0xff]
      %v792 = vld [vmem:[#allocation10 + $0x540] sm:$0xff]
      %v793 = vld [vmem:[#allocation10 + $0x548] sm:$0xff]
      %v794 = vld [vmem:[#allocation10 + $0x550] sm:$0xff]
      %v795 = vld [vmem:[#allocation10 + $0x558] sm:$0xff]
      %v796 = vld [vmem:[#allocation10 + $0x560] sm:$0xff]
      %v797 = vld [vmem:[#allocation10 + $0x568] sm:$0xff]
      %v798 = vld [vmem:[#allocation10 + $0x570] sm:$0xff]
      %v799 = vld [vmem:[#allocation10 + $0x578] sm:$0xff]
      %v800 = vld [vmem:[#allocation10 + $0x580] sm:$0xff]
      %v801 = vld [vmem:[#allocation10 + $0x588] sm:$0xff]
      %v802 = vld [vmem:[#allocation10 + $0x590] sm:$0xff]
      %v803 = vld [vmem:[#allocation10 + $0x598] sm:$0xff]
      %v804 = vld [vmem:[#allocation10 + $0x5a0] sm:$0xff]
      %v805 = vld [vmem:[#allocation10 + $0x5a8] sm:$0xff]
      %v806 = vld [vmem:[#allocation10 + $0x5b0] sm:$0xff]
      %v807 = vld [vmem:[#allocation10 + $0x5b8] sm:$0xff]
      %v808 = vld [vmem:[#allocation10 + $0x5c0] sm:$0xff]
      %v809 = vld [vmem:[#allocation10 + $0x5c8] sm:$0xff]
      %v810 = vld [vmem:[#allocation10 + $0x5d0] sm:$0xff]
      %v811 = vld [vmem:[#allocation10 + $0x5d8] sm:$0xff]
      %v812 = vld [vmem:[#allocation10 + $0x5e0] sm:$0xff]
      %v813 = vld [vmem:[#allocation10 + $0x5e8] sm:$0xff]
      %v814 = vld [vmem:[#allocation10 + $0x5f0] sm:$0xff]
      %v815 = vld [vmem:[#allocation10 + $0x5f8] sm:$0xff]
      %v816 = vld [vmem:[#allocation10 + $0x600] sm:$0xff]
      %v817 = vld [vmem:[#allocation10 + $0x608] sm:$0xff]
      %v818 = vld [vmem:[#allocation10 + $0x610] sm:$0xff]
      %v819 = vld [vmem:[#allocation10 + $0x618] sm:$0xff]
      %v820 = vld [vmem:[#allocation10 + $0x620] sm:$0xff]
      %v821 = vld [vmem:[#allocation10 + $0x628] sm:$0xff]
      %v822 = vld [vmem:[#allocation10 + $0x630] sm:$0xff]
      %v823 = vld [vmem:[#allocation10 + $0x638] sm:$0xff]
      %v824 = vld [vmem:[#allocation10 + $0x640] sm:$0xff]
      %v825 = vld [vmem:[#allocation10 + $0x648] sm:$0xff]
      %v826 = vld [vmem:[#allocation10 + $0x650] sm:$0xff]
      %v827 = vld [vmem:[#allocation10 + $0x658] sm:$0xff]
      %v828 = vld [vmem:[#allocation10 + $0x660] sm:$0xff]
      %v829 = vld [vmem:[#allocation10 + $0x668] sm:$0xff]
      %v830 = vld [vmem:[#allocation10 + $0x670] sm:$0xff]
      %v831 = vld [vmem:[#allocation10 + $0x678] sm:$0xff]
      %v832 = vld [vmem:[#allocation10 + $0x680] sm:$0xff]
      %v833 = vld [vmem:[#allocation10 + $0x688] sm:$0xff]
      %v834 = vld [vmem:[#allocation10 + $0x690] sm:$0xff]
      %v835 = vld [vmem:[#allocation10 + $0x698] sm:$0xff]
      %v836 = vld [vmem:[#allocation10 + $0x6a0] sm:$0xff]
      %v837 = vld [vmem:[#allocation10 + $0x6a8] sm:$0xff]
      %v838 = vld [vmem:[#allocation10 + $0x6b0] sm:$0xff]
      %v839 = vld [vmem:[#allocation10 + $0x6b8] sm:$0xff]
      %v840 = vld [vmem:[#allocation10 + $0x6c0] sm:$0xff]
      %v841 = vld [vmem:[#allocation10 + $0x6c8] sm:$0xff]
      %v842 = vld [vmem:[#allocation10 + $0x6d0] sm:$0xff]
      %v843 = vld [vmem:[#allocation10 + $0x6d8] sm:$0xff]
      %v844 = vld [vmem:[#allocation10 + $0x6e0] sm:$0xff]
      %v845 = vld [vmem:[#allocation10 + $0x6e8] sm:$0xff]
      %v846 = vld [vmem:[#allocation10 + $0x6f0] sm:$0xff]
      %v847 = vld [vmem:[#allocation10 + $0x6f8] sm:$0xff]
      %v848 = vld [vmem:[#allocation10 + $0x700] sm:$0xff]
      %v849 = vld [vmem:[#allocation10 + $0x708] sm:$0xff]
      %v850 = vld [vmem:[#allocation10 + $0x710] sm:$0xff]
      %v851 = vld [vmem:[#allocation10 + $0x718] sm:$0xff]
      %v852 = vld [vmem:[#allocation10 + $0x720] sm:$0xff]
      %v853 = vld [vmem:[#allocation10 + $0x728] sm:$0xff]
      %v854 = vld [vmem:[#allocation10 + $0x730] sm:$0xff]
      %v855 = vld [vmem:[#allocation10 + $0x738] sm:$0xff]
      %v856 = vld [vmem:[#allocation10 + $0x740] sm:$0xff]
      %v857 = vld [vmem:[#allocation10 + $0x748] sm:$0xff]
      %v858 = vld [vmem:[#allocation10 + $0x750] sm:$0xff]
      %v859 = vld [vmem:[#allocation10 + $0x758] sm:$0xff]
      %v860 = vld [vmem:[#allocation10 + $0x760] sm:$0xff]
      %v861 = vld [vmem:[#allocation10 + $0x768] sm:$0xff]
      %v862 = vld [vmem:[#allocation10 + $0x770] sm:$0xff]
      %v863 = vld [vmem:[#allocation10 + $0x778] sm:$0xff]
      %v864 = vld [vmem:[#allocation10 + $0x780] sm:$0xff]
      %v865 = vld [vmem:[#allocation10 + $0x788] sm:$0xff]
      %v866 = vld [vmem:[#allocation10 + $0x790] sm:$0xff]
      %v867 = vld [vmem:[#allocation10 + $0x798] sm:$0xff]
      %v868 = vld [vmem:[#allocation10 + $0x7a0] sm:$0xff]
      %v869 = vld [vmem:[#allocation10 + $0x7a8] sm:$0xff]
      %v870 = vld [vmem:[#allocation10 + $0x7b0] sm:$0xff]
      %v871 = vld [vmem:[#allocation10 + $0x7b8] sm:$0xff]
      %v872 = vld [vmem:[#allocation10 + $0x7c0] sm:$0xff]
      %v873 = vld [vmem:[#allocation10 + $0x7c8] sm:$0xff]
      %v874 = vld [vmem:[#allocation10 + $0x7d0] sm:$0xff]
      %v875 = vld [vmem:[#allocation10 + $0x7d8] sm:$0xff]
      %v876 = vld [vmem:[#allocation10 + $0x7e0] sm:$0xff]
      %v877 = vld [vmem:[#allocation10 + $0x7e8] sm:$0xff]
      %v878 = vld [vmem:[#allocation10 + $0x7f0] sm:$0xff]
      %v879 = vld [vmem:[#allocation10 + $0x7f8] sm:$0xff]
      %v880 = vld [vmem:[%s5] sm:$0xf]
      %v882 = vperm.slane %v880, 0
      %v883 = vperm.slane %v880, 1
      %v884 = vperm.slane %v880, 2
      %v885 = vperm.slane %v880, 3
      %890 = vmatpush.msra.mxu0 %v684
      %891 = vmatpush.msra.mxu0 %v680
      %892 = vmatpush.msra.mxu0 %v676
      %893 = vmatpush.msra.mxu0 %v672
      %894 = vmatpush.msra.mxu0 %v668
      %895 = vmatpush.msra.mxu0 %v664
      %896 = vmatpush.msra.mxu0 %v660
      %897 = vmatpush.msra.mxu0 %v656
      %898 = vmatpush.msra.mxu0 %v652
      %899 = vmatpush.msra.mxu0 %v648
      %900 = vmatpush.msra.mxu0 %v644
      %901 = vmatpush.msra.mxu0 %v640
      %902 = vmatpush.msra.mxu0 %v636
      %903 = vmatpush.msra.mxu0 %v632
      %904 = vmatpush.msra.mxu0 %v628
      %905 = vmatpush.msra.mxu0 %v624
      %906 = vmatmul.f32.gmra.mxu0 %v620
      %v907 = vpop.f32.mrf.mxu0
      %v908 = vadd.f32 %v882, %v907
      %909 = vdwg.mxu0
      %910 = vmatpush.msra.mxu0 %v748
      %911 = vmatpush.msra.mxu0 %v744
      %912 = vmatpush.msra.mxu0 %v740
      %913 = vmatpush.msra.mxu0 %v736
      %914 = vmatpush.msra.mxu0 %v732
      %915 = vmatpush.msra.mxu0 %v728
      %916 = vmatpush.msra.mxu0 %v724
      %917 = vmatpush.msra.mxu0 %v720
      %918 = vmatpush.msra.mxu0 %v716
      %919 = vmatpush.msra.mxu0 %v712
      %920 = vmatpush.msra.mxu0 %v708
      %921 = vmatpush.msra.mxu0 %v704
      %922 = vmatpush.msra.mxu0 %v700
      %923 = vmatpush.msra.mxu0 %v696
      %924 = vmatpush.msra.mxu0 %v692
      %925 = vmatpush.msra.mxu0 %v688
      %926 = vmatmul.f32.gmra.mxu0 %v621
      %v927 = vpop.f32.mrf.mxu0
      %v928 = vadd.f32 %v908, %v927
      %929 = vdwg.mxu0
      %930 = vmatpush.msra.mxu0 %v812
      %931 = vmatpush.msra.mxu0 %v808
      %932 = vmatpush.msra.mxu0 %v804
      %933 = vmatpush.msra.mxu0 %v800
      %934 = vmatpush.msra.mxu0 %v796
      %935 = vmatpush.msra.mxu0 %v792
      %936 = vmatpush.msra.mxu0 %v788
      %937 = vmatpush.msra.mxu0 %v784
      %938 = vmatpush.msra.mxu0 %v780
      %939 = vmatpush.msra.mxu0 %v776
      %940 = vmatpush.msra.mxu0 %v772
      %941 = vmatpush.msra.mxu0 %v768
      %942 = vmatpush.msra.mxu0 %v764
      %943 = vmatpush.msra.mxu0 %v760
      %944 = vmatpush.msra.mxu0 %v756
      %945 = vmatpush.msra.mxu0 %v752
      %946 = vmatmul.f32.gmra.mxu0 %v622
      %v947 = vpop.f32.mrf.mxu0
      %v948 = vadd.f32 %v928, %v947
      %949 = vdwg.mxu0
      %950 = vmatpush.msra.mxu0 %v876
      %951 = vmatpush.msra.mxu0 %v872
      %952 = vmatpush.msra.mxu0 %v868
      %953 = vmatpush.msra.mxu0 %v864
      %954 = vmatpush.msra.mxu0 %v860
      %955 = vmatpush.msra.mxu0 %v856
      %956 = vmatpush.msra.mxu0 %v852
      %957 = vmatpush.msra.mxu0 %v848
      %958 = vmatpush.msra.mxu0 %v844
      %959 = vmatpush.msra.mxu0 %v840
      %960 = vmatpush.msra.mxu0 %v836
      %961 = vmatpush.msra.mxu0 %v832
      %962 = vmatpush.msra.mxu0 %v828
      %963 = vmatpush.msra.mxu0 %v824
      %964 = vmatpush.msra.mxu0 %v820
      %965 = vmatpush.msra.mxu0 %v816
      %966 = vmatmul.f32.gmra.mxu0 %v623
      %v967 = vpop.f32.mrf.mxu0
      %v968 = vadd.f32 %v948, %v967
      %969 = vdwg.mxu0
      %970 = vmatpush.msra.mxu0 %v685
      %971 = vmatpush.msra.mxu0 %v681
      %972 = vmatpush.msra.mxu0 %v677
      %973 = vmatpush.msra.mxu0 %v673
      %974 = vmatpush.msra.mxu0 %v669
      %975 = vmatpush.msra.mxu0 %v665
      %976 = vmatpush.msra.mxu0 %v661
      %977 = vmatpush.msra.mxu0 %v657
      %978 = vmatpush.msra.mxu0 %v653
      %979 = vmatpush.msra.mxu0 %v649
      %980 = vmatpush.msra.mxu0 %v645
      %981 = vmatpush.msra.mxu0 %v641
      %982 = vmatpush.msra.mxu0 %v637
      %983 = vmatpush.msra.mxu0 %v633
      %984 = vmatpush.msra.mxu0 %v629
      %985 = vmatpush.msra.mxu0 %v625
      %986 = vmatmul.f32.gmra.mxu0 %v620
      %v987 = vpop.f32.mrf.mxu0
      %v988 = vadd.f32 %v883, %v987
      %989 = vdwg.mxu0
      %990 = vmatpush.msra.mxu0 %v749
      %991 = vmatpush.msra.mxu0 %v745
      %992 = vmatpush.msra.mxu0 %v741
      %993 = vmatpush.msra.mxu0 %v737
      %994 = vmatpush.msra.mxu0 %v733
      %995 = vmatpush.msra.mxu0 %v729
      %996 = vmatpush.msra.mxu0 %v725
      %997 = vmatpush.msra.mxu0 %v721
      %998 = vmatpush.msra.mxu0 %v717
      %999 = vmatpush.msra.mxu0 %v713
      %1000 = vmatpush.msra.mxu0 %v709
      %1001 = vmatpush.msra.mxu0 %v705
      %1002 = vmatpush.msra.mxu0 %v701
      %1003 = vmatpush.msra.mxu0 %v697
      %1004 = vmatpush.msra.mxu0 %v693
      %1005 = vmatpush.msra.mxu0 %v689
      %1006 = vmatmul.f32.gmra.mxu0 %v621
      %v1007 = vpop.f32.mrf.mxu0
      %v1008 = vadd.f32 %v988, %v1007
      %1009 = vdwg.mxu0
      %1010 = vmatpush.msra.mxu0 %v813
      %1011 = vmatpush.msra.mxu0 %v809
      %1012 = vmatpush.msra.mxu0 %v805
      %1013 = vmatpush.msra.mxu0 %v801
      %1014 = vmatpush.msra.mxu0 %v797
      %1015 = vmatpush.msra.mxu0 %v793
      %1016 = vmatpush.msra.mxu0 %v789
      %1017 = vmatpush.msra.mxu0 %v785
      %1018 = vmatpush.msra.mxu0 %v781
      %1019 = vmatpush.msra.mxu0 %v777
      %1020 = vmatpush.msra.mxu0 %v773
      %1021 = vmatpush.msra.mxu0 %v769
      %1022 = vmatpush.msra.mxu0 %v765
      %1023 = vmatpush.msra.mxu0 %v761
      %1024 = vmatpush.msra.mxu0 %v757
      %1025 = vmatpush.msra.mxu0 %v753
      %1026 = vmatmul.f32.gmra.mxu0 %v622
      %v1027 = vpop.f32.mrf.mxu0
      %v1028 = vadd.f32 %v1008, %v1027
      %1029 = vdwg.mxu0
      %1030 = vmatpush.msra.mxu0 %v877
      %1031 = vmatpush.msra.mxu0 %v873
      %1032 = vmatpush.msra.mxu0 %v869
      %1033 = vmatpush.msra.mxu0 %v865
      %1034 = vmatpush.msra.mxu0 %v861
      %1035 = vmatpush.msra.mxu0 %v857
      %1036 = vmatpush.msra.mxu0 %v853
      %1037 = vmatpush.msra.mxu0 %v849
      %1038 = vmatpush.msra.mxu0 %v845
      %1039 = vmatpush.msra.mxu0 %v841
      %1040 = vmatpush.msra.mxu0 %v837
      %1041 = vmatpush.msra.mxu0 %v833
      %1042 = vmatpush.msra.mxu0 %v829
      %1043 = vmatpush.msra.mxu0 %v825
      %1044 = vmatpush.msra.mxu0 %v821
      %1045 = vmatpush.msra.mxu0 %v817
      %1046 = vmatmul.f32.gmra.mxu0 %v623
      %v1047 = vpop.f32.mrf.mxu0
      %v1048 = vadd.f32 %v1028, %v1047
      %1049 = vdwg.mxu0
      %1050 = vmatpush.msra.mxu0 %v686
      %1051 = vmatpush.msra.mxu0 %v682
      %1052 = vmatpush.msra.mxu0 %v678
      %1053 = vmatpush.msra.mxu0 %v674
      %1054 = vmatpush.msra.mxu0 %v670
      %1055 = vmatpush.msra.mxu0 %v666
      %1056 = vmatpush.msra.mxu0 %v662
      %1057 = vmatpush.msra.mxu0 %v658
      %1058 = vmatpush.msra.mxu0 %v654
      %1059 = vmatpush.msra.mxu0 %v650
      %1060 = vmatpush.msra.mxu0 %v646
      %1061 = vmatpush.msra.mxu0 %v642
      %1062 = vmatpush.msra.mxu0 %v638
      %1063 = vmatpush.msra.mxu0 %v634
      %1064 = vmatpush.msra.mxu0 %v630
      %1065 = vmatpush.msra.mxu0 %v626
      %1066 = vmatmul.f32.gmra.mxu0 %v620
      %v1067 = vpop.f32.mrf.mxu0
      %v1068 = vadd.f32 %v884, %v1067
      %1069 = vdwg.mxu0
      %1070 = vmatpush.msra.mxu0 %v750
      %1071 = vmatpush.msra.mxu0 %v746
      %1072 = vmatpush.msra.mxu0 %v742
      %1073 = vmatpush.msra.mxu0 %v738
      %1074 = vmatpush.msra.mxu0 %v734
      %1075 = vmatpush.msra.mxu0 %v730
      %1076 = vmatpush.msra.mxu0 %v726
      %1077 = vmatpush.msra.mxu0 %v722
      %1078 = vmatpush.msra.mxu0 %v718
      %1079 = vmatpush.msra.mxu0 %v714
      %1080 = vmatpush.msra.mxu0 %v710
      %1081 = vmatpush.msra.mxu0 %v706
      %1082 = vmatpush.msra.mxu0 %v702
      %1083 = vmatpush.msra.mxu0 %v698
      %1084 = vmatpush.msra.mxu0 %v694
      %1085 = vmatpush.msra.mxu0 %v690
      %1086 = vmatmul.f32.gmra.mxu0 %v621
      %v1087 = vpop.f32.mrf.mxu0
      %v1088 = vadd.f32 %v1068, %v1087
      %1089 = vdwg.mxu0
      %1090 = vmatpush.msra.mxu0 %v814
      %1091 = vmatpush.msra.mxu0 %v810
      %1092 = vmatpush.msra.mxu0 %v806
      %1093 = vmatpush.msra.mxu0 %v802
      %1094 = vmatpush.msra.mxu0 %v798
      %1095 = vmatpush.msra.mxu0 %v794
      %1096 = vmatpush.msra.mxu0 %v790
      %1097 = vmatpush.msra.mxu0 %v786
      %1098 = vmatpush.msra.mxu0 %v782
      %1099 = vmatpush.msra.mxu0 %v778
      %1100 = vmatpush.msra.mxu0 %v774
      %1101 = vmatpush.msra.mxu0 %v770
      %1102 = vmatpush.msra.mxu0 %v766
      %1103 = vmatpush.msra.mxu0 %v762
      %1104 = vmatpush.msra.mxu0 %v758
      %1105 = vmatpush.msra.mxu0 %v754
      %1106 = vmatmul.f32.gmra.mxu0 %v622
      %v1107 = vpop.f32.mrf.mxu0
      %v1108 = vadd.f32 %v1088, %v1107
      %1109 = vdwg.mxu0
      %1110 = vmatpush.msra.mxu0 %v878
      %1111 = vmatpush.msra.mxu0 %v874
      %1112 = vmatpush.msra.mxu0 %v870
      %1113 = vmatpush.msra.mxu0 %v866
      %1114 = vmatpush.msra.mxu0 %v862
      %1115 = vmatpush.msra.mxu0 %v858
      %1116 = vmatpush.msra.mxu0 %v854
      %1117 = vmatpush.msra.mxu0 %v850
      %1118 = vmatpush.msra.mxu0 %v846
      %1119 = vmatpush.msra.mxu0 %v842
      %1120 = vmatpush.msra.mxu0 %v838
      %1121 = vmatpush.msra.mxu0 %v834
      %1122 = vmatpush.msra.mxu0 %v830
      %1123 = vmatpush.msra.mxu0 %v826
      %1124 = vmatpush.msra.mxu0 %v822
      %1125 = vmatpush.msra.mxu0 %v818
      %1126 = vmatmul.f32.gmra.mxu0 %v623
      %v1127 = vpop.f32.mrf.mxu0
      %v1128 = vadd.f32 %v1108, %v1127
      %1129 = vdwg.mxu0
      %1130 = vmatpush.msra.mxu0 %v687
      %1131 = vmatpush.msra.mxu0 %v683
      %1132 = vmatpush.msra.mxu0 %v679
      %1133 = vmatpush.msra.mxu0 %v675
      %1134 = vmatpush.msra.mxu0 %v671
      %1135 = vmatpush.msra.mxu0 %v667
      %1136 = vmatpush.msra.mxu0 %v663
      %1137 = vmatpush.msra.mxu0 %v659
      %1138 = vmatpush.msra.mxu0 %v655
      %1139 = vmatpush.msra.mxu0 %v651
      %1140 = vmatpush.msra.mxu0 %v647
      %1141 = vmatpush.msra.mxu0 %v643
      %1142 = vmatpush.msra.mxu0 %v639
      %1143 = vmatpush.msra.mxu0 %v635
      %1144 = vmatpush.msra.mxu0 %v631
      %1145 = vmatpush.msra.mxu0 %v627
      %1146 = vmatmul.f32.gmra.mxu0 %v620
      %v1147 = vpop.f32.mrf.mxu0
      %v1148 = vadd.f32 %v885, %v1147
      %1149 = vdwg.mxu0
      %1150 = vmatpush.msra.mxu0 %v751
      %1151 = vmatpush.msra.mxu0 %v747
      %1152 = vmatpush.msra.mxu0 %v743
      %1153 = vmatpush.msra.mxu0 %v739
      %1154 = vmatpush.msra.mxu0 %v735
      %1155 = vmatpush.msra.mxu0 %v731
      %1156 = vmatpush.msra.mxu0 %v727
      %1157 = vmatpush.msra.mxu0 %v723
      %1158 = vmatpush.msra.mxu0 %v719
      %1159 = vmatpush.msra.mxu0 %v715
      %1160 = vmatpush.msra.mxu0 %v711
      %1161 = vmatpush.msra.mxu0 %v707
      %1162 = vmatpush.msra.mxu0 %v703
      %1163 = vmatpush.msra.mxu0 %v699
      %1164 = vmatpush.msra.mxu0 %v695
      %1165 = vmatpush.msra.mxu0 %v691
      %1166 = vmatmul.f32.gmra.mxu0 %v621
      %v1167 = vpop.f32.mrf.mxu0
      %v1168 = vadd.f32 %v1148, %v1167
      %1169 = vdwg.mxu0
      %1170 = vmatpush.msra.mxu0 %v815
      %1171 = vmatpush.msra.mxu0 %v811
      %1172 = vmatpush.msra.mxu0 %v807
      %1173 = vmatpush.msra.mxu0 %v803
      %1174 = vmatpush.msra.mxu0 %v799
      %1175 = vmatpush.msra.mxu0 %v795
      %1176 = vmatpush.msra.mxu0 %v791
      %1177 = vmatpush.msra.mxu0 %v787
      %1178 = vmatpush.msra.mxu0 %v783
      %1179 = vmatpush.msra.mxu0 %v779
      %1180 = vmatpush.msra.mxu0 %v775
      %1181 = vmatpush.msra.mxu0 %v771
      %1182 = vmatpush.msra.mxu0 %v767
      %1183 = vmatpush.msra.mxu0 %v763
      %1184 = vmatpush.msra.mxu0 %v759
      %1185 = vmatpush.msra.mxu0 %v755
      %1186 = vmatmul.f32.gmra.mxu0 %v622
      %v1187 = vpop.f32.mrf.mxu0
      %v1188 = vadd.f32 %v1168, %v1187
      %1189 = vdwg.mxu0
      %1190 = vmatpush.msra.mxu0 %v879
      %1191 = vmatpush.msra.mxu0 %v875
      %1192 = vmatpush.msra.mxu0 %v871
      %1193 = vmatpush.msra.mxu0 %v867
      %1194 = vmatpush.msra.mxu0 %v863
      %1195 = vmatpush.msra.mxu0 %v859
      %1196 = vmatpush.msra.mxu0 %v855
      %1197 = vmatpush.msra.mxu0 %v851
      %1198 = vmatpush.msra.mxu0 %v847
      %1199 = vmatpush.msra.mxu0 %v843
      %1200 = vmatpush.msra.mxu0 %v839
      %1201 = vmatpush.msra.mxu0 %v835
      %1202 = vmatpush.msra.mxu0 %v831
      %1203 = vmatpush.msra.mxu0 %v827
      %1204 = vmatpush.msra.mxu0 %v823
      %1205 = vmatpush.msra.mxu0 %v819
      %1206 = vmatmul.f32.gmra.mxu0 %v623
      %v1207 = vpop.f32.mrf.mxu0
      %v1208 = vadd.f32 %v1188, %v1207
      %1209 = vdwg.mxu0
      %v1210 = vmax.f32 %v968, 0.0
      %v1211 = vmax.f32 %v1048, 0.0
      %v1212 = vmax.f32 %v1128, 0.0
      %v1213 = vmax.f32 %v1208, 0.0
      %v1214 = vld [vmem:[#allocation11] sm:$0xff]
      %v1215 = vld [vmem:[#allocation11 + $0x8] sm:$0xff]
      %v1216 = vld [vmem:[#allocation11 + $0x10] sm:$0xff]
      %v1217 = vld [vmem:[#allocation11 + $0x18] sm:$0xff]
      %v1218 = vld [vmem:[#allocation11 + $0x20] sm:$0xff]
      %v1219 = vld [vmem:[#allocation11 + $0x28] sm:$0xff]
      %v1220 = vld [vmem:[#allocation11 + $0x30] sm:$0xff]
      %v1221 = vld [vmem:[#allocation11 + $0x38] sm:$0xff]
      %v1222 = vld [vmem:[#allocation11 + $0x40] sm:$0xff]
      %v1223 = vld [vmem:[#allocation11 + $0x48] sm:$0xff]
      %v1224 = vld [vmem:[#allocation11 + $0x50] sm:$0xff]
      %v1225 = vld [vmem:[#allocation11 + $0x58] sm:$0xff]
      %v1226 = vld [vmem:[#allocation11 + $0x60] sm:$0xff]
      %v1227 = vld [vmem:[#allocation11 + $0x68] sm:$0xff]
      %v1228 = vld [vmem:[#allocation11 + $0x70] sm:$0xff]
      %v1229 = vld [vmem:[#allocation11 + $0x78] sm:$0xff]
      %v1230 = vld [vmem:[#allocation11 + $0x80] sm:$0xff]
      %v1231 = vld [vmem:[#allocation11 + $0x88] sm:$0xff]
      %v1232 = vld [vmem:[#allocation11 + $0x90] sm:$0xff]
      %v1233 = vld [vmem:[#allocation11 + $0x98] sm:$0xff]
      %v1234 = vld [vmem:[#allocation11 + $0xa0] sm:$0xff]
      %v1235 = vld [vmem:[#allocation11 + $0xa8] sm:$0xff]
      %v1236 = vld [vmem:[#allocation11 + $0xb0] sm:$0xff]
      %v1237 = vld [vmem:[#allocation11 + $0xb8] sm:$0xff]
      %v1238 = vld [vmem:[#allocation11 + $0xc0] sm:$0xff]
      %v1239 = vld [vmem:[#allocation11 + $0xc8] sm:$0xff]
      %v1240 = vld [vmem:[#allocation11 + $0xd0] sm:$0xff]
      %v1241 = vld [vmem:[#allocation11 + $0xd8] sm:$0xff]
      %v1242 = vld [vmem:[#allocation11 + $0xe0] sm:$0xff]
      %v1243 = vld [vmem:[#allocation11 + $0xe8] sm:$0xff]
      %v1244 = vld [vmem:[#allocation11 + $0xf0] sm:$0xff]
      %v1245 = vld [vmem:[#allocation11 + $0xf8] sm:$0xff]
      %v1246 = vld [vmem:[#allocation11 + $0x100] sm:$0xff]
      %v1247 = vld [vmem:[#allocation11 + $0x108] sm:$0xff]
      %v1248 = vld [vmem:[#allocation11 + $0x110] sm:$0xff]
      %v1249 = vld [vmem:[#allocation11 + $0x118] sm:$0xff]
      %v1250 = vld [vmem:[#allocation11 + $0x120] sm:$0xff]
      %v1251 = vld [vmem:[#allocation11 + $0x128] sm:$0xff]
      %v1252 = vld [vmem:[#allocation11 + $0x130] sm:$0xff]
      %v1253 = vld [vmem:[#allocation11 + $0x138] sm:$0xff]
      %v1254 = vld [vmem:[#allocation11 + $0x140] sm:$0xff]
      %v1255 = vld [vmem:[#allocation11 + $0x148] sm:$0xff]
      %v1256 = vld [vmem:[#allocation11 + $0x150] sm:$0xff]
      %v1257 = vld [vmem:[#allocation11 + $0x158] sm:$0xff]
      %v1258 = vld [vmem:[#allocation11 + $0x160] sm:$0xff]
      %v1259 = vld [vmem:[#allocation11 + $0x168] sm:$0xff]
      %v1260 = vld [vmem:[#allocation11 + $0x170] sm:$0xff]
      %v1261 = vld [vmem:[#allocation11 + $0x178] sm:$0xff]
      %v1262 = vld [vmem:[#allocation11 + $0x180] sm:$0xff]
      %v1263 = vld [vmem:[#allocation11 + $0x188] sm:$0xff]
      %v1264 = vld [vmem:[#allocation11 + $0x190] sm:$0xff]
      %v1265 = vld [vmem:[#allocation11 + $0x198] sm:$0xff]
      %v1266 = vld [vmem:[#allocation11 + $0x1a0] sm:$0xff]
      %v1267 = vld [vmem:[#allocation11 + $0x1a8] sm:$0xff]
      %v1268 = vld [vmem:[#allocation11 + $0x1b0] sm:$0xff]
      %v1269 = vld [vmem:[#allocation11 + $0x1b8] sm:$0xff]
      %v1270 = vld [vmem:[#allocation11 + $0x1c0] sm:$0xff]
      %v1271 = vld [vmem:[#allocation11 + $0x1c8] sm:$0xff]
      %v1272 = vld [vmem:[#allocation11 + $0x1d0] sm:$0xff]
      %v1273 = vld [vmem:[#allocation11 + $0x1d8] sm:$0xff]
      %v1274 = vld [vmem:[#allocation11 + $0x1e0] sm:$0xff]
      %v1275 = vld [vmem:[#allocation11 + $0x1e8] sm:$0xff]
      %v1276 = vld [vmem:[#allocation11 + $0x1f0] sm:$0xff]
      %v1277 = vld [vmem:[#allocation11 + $0x1f8] sm:$0xff]
      %v1278 = vld [vmem:[#allocation11 + $0x200] sm:$0xff]
      %v1279 = vld [vmem:[#allocation11 + $0x208] sm:$0xff]
      %v1280 = vld [vmem:[#allocation11 + $0x210] sm:$0xff]
      %v1281 = vld [vmem:[#allocation11 + $0x218] sm:$0xff]
      %v1282 = vld [vmem:[#allocation11 + $0x220] sm:$0xff]
      %v1283 = vld [vmem:[#allocation11 + $0x228] sm:$0xff]
      %v1284 = vld [vmem:[#allocation11 + $0x230] sm:$0xff]
      %v1285 = vld [vmem:[#allocation11 + $0x238] sm:$0xff]
      %v1286 = vld [vmem:[#allocation11 + $0x240] sm:$0xff]
      %v1287 = vld [vmem:[#allocation11 + $0x248] sm:$0xff]
      %v1288 = vld [vmem:[#allocation11 + $0x250] sm:$0xff]
      %v1289 = vld [vmem:[#allocation11 + $0x258] sm:$0xff]
      %v1290 = vld [vmem:[#allocation11 + $0x260] sm:$0xff]
      %v1291 = vld [vmem:[#allocation11 + $0x268] sm:$0xff]
      %v1292 = vld [vmem:[#allocation11 + $0x270] sm:$0xff]
      %v1293 = vld [vmem:[#allocation11 + $0x278] sm:$0xff]
      %v1294 = vld [vmem:[#allocation11 + $0x280] sm:$0xff]
      %v1295 = vld [vmem:[#allocation11 + $0x288] sm:$0xff]
      %v1296 = vld [vmem:[#allocation11 + $0x290] sm:$0xff]
      %v1297 = vld [vmem:[#allocation11 + $0x298] sm:$0xff]
      %v1298 = vld [vmem:[#allocation11 + $0x2a0] sm:$0xff]
      %v1299 = vld [vmem:[#allocation11 + $0x2a8] sm:$0xff]
      %v1300 = vld [vmem:[#allocation11 + $0x2b0] sm:$0xff]
      %v1301 = vld [vmem:[#allocation11 + $0x2b8] sm:$0xff]
      %v1302 = vld [vmem:[#allocation11 + $0x2c0] sm:$0xff]
      %v1303 = vld [vmem:[#allocation11 + $0x2c8] sm:$0xff]
      %v1304 = vld [vmem:[#allocation11 + $0x2d0] sm:$0xff]
      %v1305 = vld [vmem:[#allocation11 + $0x2d8] sm:$0xff]
      %v1306 = vld [vmem:[#allocation11 + $0x2e0] sm:$0xff]
      %v1307 = vld [vmem:[#allocation11 + $0x2e8] sm:$0xff]
      %v1308 = vld [vmem:[#allocation11 + $0x2f0] sm:$0xff]
      %v1309 = vld [vmem:[#allocation11 + $0x2f8] sm:$0xff]
      %v1310 = vld [vmem:[#allocation11 + $0x300] sm:$0xff]
      %v1311 = vld [vmem:[#allocation11 + $0x308] sm:$0xff]
      %v1312 = vld [vmem:[#allocation11 + $0x310] sm:$0xff]
      %v1313 = vld [vmem:[#allocation11 + $0x318] sm:$0xff]
      %v1314 = vld [vmem:[#allocation11 + $0x320] sm:$0xff]
      %v1315 = vld [vmem:[#allocation11 + $0x328] sm:$0xff]
      %v1316 = vld [vmem:[#allocation11 + $0x330] sm:$0xff]
      %v1317 = vld [vmem:[#allocation11 + $0x338] sm:$0xff]
      %v1318 = vld [vmem:[#allocation11 + $0x340] sm:$0xff]
      %v1319 = vld [vmem:[#allocation11 + $0x348] sm:$0xff]
      %v1320 = vld [vmem:[#allocation11 + $0x350] sm:$0xff]
      %v1321 = vld [vmem:[#allocation11 + $0x358] sm:$0xff]
      %v1322 = vld [vmem:[#allocation11 + $0x360] sm:$0xff]
      %v1323 = vld [vmem:[#allocation11 + $0x368] sm:$0xff]
      %v1324 = vld [vmem:[#allocation11 + $0x370] sm:$0xff]
      %v1325 = vld [vmem:[#allocation11 + $0x378] sm:$0xff]
      %v1326 = vld [vmem:[#allocation11 + $0x380] sm:$0xff]
      %v1327 = vld [vmem:[#allocation11 + $0x388] sm:$0xff]
      %v1328 = vld [vmem:[#allocation11 + $0x390] sm:$0xff]
      %v1329 = vld [vmem:[#allocation11 + $0x398] sm:$0xff]
      %v1330 = vld [vmem:[#allocation11 + $0x3a0] sm:$0xff]
      %v1331 = vld [vmem:[#allocation11 + $0x3a8] sm:$0xff]
      %v1332 = vld [vmem:[#allocation11 + $0x3b0] sm:$0xff]
      %v1333 = vld [vmem:[#allocation11 + $0x3b8] sm:$0xff]
      %v1334 = vld [vmem:[#allocation11 + $0x3c0] sm:$0xff]
      %v1335 = vld [vmem:[#allocation11 + $0x3c8] sm:$0xff]
      %v1336 = vld [vmem:[#allocation11 + $0x3d0] sm:$0xff]
      %v1337 = vld [vmem:[#allocation11 + $0x3d8] sm:$0xff]
      %v1338 = vld [vmem:[#allocation11 + $0x3e0] sm:$0xff]
      %v1339 = vld [vmem:[#allocation11 + $0x3e8] sm:$0xff]
      %v1340 = vld [vmem:[#allocation11 + $0x3f0] sm:$0xff]
      %v1341 = vld [vmem:[#allocation11 + $0x3f8] sm:$0xff]
      %v1342 = vld [vmem:[%s7] sm:$0x3]
      %v1344 = vperm.slane %v1342, 0
      %v1345 = vperm.slane %v1342, 1
      %1348 = vmatpush.msra.mxu0 %v1244
      %1349 = vmatpush.msra.mxu0 %v1242
      %1350 = vmatpush.msra.mxu0 %v1240
      %1351 = vmatpush.msra.mxu0 %v1238
      %1352 = vmatpush.msra.mxu0 %v1236
      %1353 = vmatpush.msra.mxu0 %v1234
      %1354 = vmatpush.msra.mxu0 %v1232
      %1355 = vmatpush.msra.mxu0 %v1230
      %1356 = vmatpush.msra.mxu0 %v1228
      %1357 = vmatpush.msra.mxu0 %v1226
      %1358 = vmatpush.msra.mxu0 %v1224
      %1359 = vmatpush.msra.mxu0 %v1222
      %1360 = vmatpush.msra.mxu0 %v1220
      %1361 = vmatpush.msra.mxu0 %v1218
      %1362 = vmatpush.msra.mxu0 %v1216
      %1363 = vmatpush.msra.mxu0 %v1214
      %1364 = vmatmul.f32.gmra.mxu0 %v1210
      %v1365 = vpop.f32.mrf.mxu0
      %v1366 = vadd.f32 %v1344, %v1365
      %1367 = vdwg.mxu0
      %1368 = vmatpush.msra.mxu0 %v1276
      %1369 = vmatpush.msra.mxu0 %v1274
      %1370 = vmatpush.msra.mxu0 %v1272
      %1371 = vmatpush.msra.mxu0 %v1270
      %1372 = vmatpush.msra.mxu0 %v1268
      %1373 = vmatpush.msra.mxu0 %v1266
      %1374 = vmatpush.msra.mxu0 %v1264
      %1375 = vmatpush.msra.mxu0 %v1262
      %1376 = vmatpush.msra.mxu0 %v1260
      %1377 = vmatpush.msra.mxu0 %v1258
      %1378 = vmatpush.msra.mxu0 %v1256
      %1379 = vmatpush.msra.mxu0 %v1254
      %1380 = vmatpush.msra.mxu0 %v1252
      %1381 = vmatpush.msra.mxu0 %v1250
      %1382 = vmatpush.msra.mxu0 %v1248
      %1383 = vmatpush.msra.mxu0 %v1246
      %1384 = vmatmul.f32.gmra.mxu0 %v1211
      %v1385 = vpop.f32.mrf.mxu0
      %v1386 = vadd.f32 %v1366, %v1385
      %1387 = vdwg.mxu0
      %1388 = vmatpush.msra.mxu0 %v1308
      %1389 = vmatpush.msra.mxu0 %v1306
      %1390 = vmatpush.msra.mxu0 %v1304
      %1391 = vmatpush.msra.mxu0 %v1302
      %1392 = vmatpush.msra.mxu0 %v1300
      %1393 = vmatpush.msra.mxu0 %v1298
      %1394 = vmatpush.msra.mxu0 %v1296
      %1395 = vmatpush.msra.mxu0 %v1294
      %1396 = vmatpush.msra.mxu0 %v1292
      %1397 = vmatpush.msra.mxu0 %v1290
      %1398 = vmatpush.msra.mxu0 %v1288
      %1399 = vmatpush.msra.mxu0 %v1286
      %1400 = vmatpush.msra.mxu0 %v1284
      %1401 = vmatpush.msra.mxu0 %v1282
      %1402 = vmatpush.msra.mxu0 %v1280
      %1403 = vmatpush.msra.mxu0 %v1278
      %1404 = vmatmul.f32.gmra.mxu0 %v1212
      %v1405 = vpop.f32.mrf.mxu0
      %v1406 = vadd.f32 %v1386, %v1405
      %1407 = vdwg.mxu0
      %1408 = vmatpush.msra.mxu0 %v1340
      %1409 = vmatpush.msra.mxu0 %v1338
      %1410 = vmatpush.msra.mxu0 %v1336
      %1411 = vmatpush.msra.mxu0 %v1334
      %1412 = vmatpush.msra.mxu0 %v1332
      %1413 = vmatpush.msra.mxu0 %v1330
      %1414 = vmatpush.msra.mxu0 %v1328
      %1415 = vmatpush.msra.mxu0 %v1326
      %1416 = vmatpush.msra.mxu0 %v1324
      %1417 = vmatpush.msra.mxu0 %v1322
      %1418 = vmatpush.msra.mxu0 %v1320
      %1419 = vmatpush.msra.mxu0 %v1318
      %1420 = vmatpush.msra.mxu0 %v1316
      %1421 = vmatpush.msra.mxu0 %v1314
      %1422 = vmatpush.msra.mxu0 %v1312
      %1423 = vmatpush.msra.mxu0 %v1310
      %1424 = vmatmul.f32.gmra.mxu0 %v1213
      %v1425 = vpop.f32.mrf.mxu0
      %v1426 = vadd.f32 %v1406, %v1425
      %1427 = vdwg.mxu0
      %1428 = vmatpush.msra.mxu0 %v1245
      %1429 = vmatpush.msra.mxu0 %v1243
      %1430 = vmatpush.msra.mxu0 %v1241
      %1431 = vmatpush.msra.mxu0 %v1239
      %1432 = vmatpush.msra.mxu0 %v1237
      %1433 = vmatpush.msra.mxu0 %v1235
      %1434 = vmatpush.msra.mxu0 %v1233
      %1435 = vmatpush.msra.mxu0 %v1231
      %1436 = vmatpush.msra.mxu0 %v1229
      %1437 = vmatpush.msra.mxu0 %v1227
      %1438 = vmatpush.msra.mxu0 %v1225
      %1439 = vmatpush.msra.mxu0 %v1223
      %1440 = vmatpush.msra.mxu0 %v1221
      %1441 = vmatpush.msra.mxu0 %v1219
      %1442 = vmatpush.msra.mxu0 %v1217
      %1443 = vmatpush.msra.mxu0 %v1215
      %1444 = vmatmul.f32.gmra.mxu0 %v1210
      %v1445 = vpop.f32.mrf.mxu0
      %v1446 = vadd.f32 %v1345, %v1445
      %1447 = vdwg.mxu0
      %1448 = vmatpush.msra.mxu0 %v1277
      %1449 = vmatpush.msra.mxu0 %v1275
      %1450 = vmatpush.msra.mxu0 %v1273
      %1451 = vmatpush.msra.mxu0 %v1271
      %1452 = vmatpush.msra.mxu0 %v1269
      %1453 = vmatpush.msra.mxu0 %v1267
      %1454 = vmatpush.msra.mxu0 %v1265
      %1455 = vmatpush.msra.mxu0 %v1263
      %1456 = vmatpush.msra.mxu0 %v1261
      %1457 = vmatpush.msra.mxu0 %v1259
      %1458 = vmatpush.msra.mxu0 %v1257
      %1459 = vmatpush.msra.mxu0 %v1255
      %1460 = vmatpush.msra.mxu0 %v1253
      %1461 = vmatpush.msra.mxu0 %v1251
      %1462 = vmatpush.msra.mxu0 %v1249
      %1463 = vmatpush.msra.mxu0 %v1247
      %1464 = vmatmul.f32.gmra.mxu0 %v1211
      %v1465 = vpop.f32.mrf.mxu0
      %v1466 = vadd.f32 %v1446, %v1465
      %1467 = vdwg.mxu0
      %1468 = vmatpush.msra.mxu0 %v1309
      %1469 = vmatpush.msra.mxu0 %v1307
      %1470 = vmatpush.msra.mxu0 %v1305
      %1471 = vmatpush.msra.mxu0 %v1303
      %1472 = vmatpush.msra.mxu0 %v1301
      %1473 = vmatpush.msra.mxu0 %v1299
      %1474 = vmatpush.msra.mxu0 %v1297
      %1475 = vmatpush.msra.mxu0 %v1295
      %1476 = vmatpush.msra.mxu0 %v1293
      %1477 = vmatpush.msra.mxu0 %v1291
      %1478 = vmatpush.msra.mxu0 %v1289
      %1479 = vmatpush.msra.mxu0 %v1287
      %1480 = vmatpush.msra.mxu0 %v1285
      %1481 = vmatpush.msra.mxu0 %v1283
      %1482 = vmatpush.msra.mxu0 %v1281
      %1483 = vmatpush.msra.mxu0 %v1279
      %1484 = vmatmul.f32.gmra.mxu0 %v1212
      %v1485 = vpop.f32.mrf.mxu0
      %v1486 = vadd.f32 %v1466, %v1485
      %1487 = vdwg.mxu0
      %1488 = vmatpush.msra.mxu0 %v1341
      %1489 = vmatpush.msra.mxu0 %v1339
      %1490 = vmatpush.msra.mxu0 %v1337
      %1491 = vmatpush.msra.mxu0 %v1335
      %1492 = vmatpush.msra.mxu0 %v1333
      %1493 = vmatpush.msra.mxu0 %v1331
      %1494 = vmatpush.msra.mxu0 %v1329
      %1495 = vmatpush.msra.mxu0 %v1327
      %1496 = vmatpush.msra.mxu0 %v1325
      %1497 = vmatpush.msra.mxu0 %v1323
      %1498 = vmatpush.msra.mxu0 %v1321
      %1499 = vmatpush.msra.mxu0 %v1319
      %1500 = vmatpush.msra.mxu0 %v1317
      %1501 = vmatpush.msra.mxu0 %v1315
      %1502 = vmatpush.msra.mxu0 %v1313
      %1503 = vmatpush.msra.mxu0 %v1311
      %1504 = vmatmul.f32.gmra.mxu0 %v1213
      %v1505 = vpop.f32.mrf.mxu0
      %v1506 = vadd.f32 %v1486, %v1505
      %1507 = vdwg.mxu0
      %v1510 = vrot.slane %v1506, 4
      %v1511 = vsel %vm256, %v1426, %v1510
      %1513 = vst [vmem:[#allocation14] sm:$0xff] %v1511
    $region65: #{projection_forward.1} parent=1 // pred_fallthru
      _
    // Predicated region
    $region66: #{projection_forward.1} parent=1 // pred_check
      _
    $region67: #{projection_forward.1} parent=1 // pred_check_branch
      %1515 = sbr.rel (0) target = $region69
    $region68: #{projection_forward.1} parent=1 // pred_region
      %1517 = vsyncadd [#allocation4], 0
      %s1519 = sshll.u32 [#allocation13], 4
      %s1520 = int_to_ptr.vmem [resolvable:$true] %s1519
      %s1521 = sshll.u32 %s8, 4
      %s1522 = int_to_ptr.hbm [resolvable:$true] %s1521
      %1524 = dma.vmem_to_hbm [thread:$0]  %s1520, 128, %s1522, [#allocation4]
    $region69: #{projection_forward.1} parent=1 // pred_fallthru
      _
    // Predicated region
    $region70: #{projection_forward.1} parent=1 // pred_check
      _
    $region71: #{projection_forward.1} parent=1 // pred_check_branch
      %1526 = sbr.rel (0) target = $region73
    $region72: #{projection_forward.1} parent=1 // pred_region
      %1528 = vsyncadd [#allocation15], 0
      %s1530 = sshll.u32 [#allocation14], 4
      %s1531 = int_to_ptr.vmem [resolvable:$true] %s1530
      %s1532 = sshll.u32 %s9, 4
      %s1533 = int_to_ptr.hbm [resolvable:$true] %s1532
      %1535 = dma.vmem_to_hbm [thread:$0]  %s1531, 128, %s1533, [#allocation15]
    $region73: #{projection_forward.1} parent=1 // pred_fallthru
      _
    // Predicated region
    $region74: #{projection_forward.1} parent=1 // pred_check
      _
    $region75: #{projection_forward.1} parent=1 // pred_check_branch
      %1537 = sbr.rel (0) target = $region77
    $region76: #{projection_forward.1} parent=1 // pred_region
      %1539 = dma.done [#allocation4], 128
    $region77: #{projection_forward.1} parent=1 // pred_fallthru
      _
    // Predicated region
    $region78: #{projection_forward.1} parent=1 // pred_check
      _
    $region79: #{projection_forward.1} parent=1 // pred_check_branch
      %1541 = sbr.rel (0) target = $region81
    $region80: #{projection_forward.1} parent=1 // pred_region
      %1543 = dma.done [#allocation15], 128
    $region81: #{projection_forward.1} parent=1 // pred_fallthru
      _
    %1544 = vsyncpa [#allocation3], 1
    %1545 = vsyncpa [#allocation6], 1
    %1546 = vsyncpa [#allocation9], 1
    %1547 = vsyncpa [#allocation12], 1
    %1548 = vsyncpa [#allocation4], 1
    %1549 = vsyncpa [#allocation15], 1

</llo_original>
